<compile_context>
chip_gen: v7x
topology: tpu7x:2x2x1
jax: 0.10.0
libtpu: 0.0.40
codegen_flags: <defaults>
</compile_context>

<pallas_src>
import jax
import jax.numpy as jnp
import numpy as np
from jax.experimental import pallas as pl
from jax.experimental.pallas import tpu as pltpu

# ---- model hyperparameters (small, consistent with the module) ----
N_EMBD = 32
N_HEADS = 4
HEADSIZE = N_EMBD // N_HEADS      # 8
BLOCKSIZE = 8                     # T == blocksize (tril mask covers full T)
EPS = 1e-5
NEG_INF = -1e30                   # finite "minus infinity" (NaN-safe under softmax)


def _norm(v):
    """LayerNorm core (gamma/beta are folded into the following linear host-side)."""
    mu = jnp.mean(v, axis=-1, keepdims=True)
    var = jnp.mean((v - mu) ** 2, axis=-1, keepdims=True)
    return (v - mu) * jax.lax.rsqrt(var + EPS)


def block_kernel(x_ref, mask_ref, wqkv_ref, wp_ref, w1_ref, w2_ref, bias_ref, o_ref):
    x = x_ref[...]                              # (N, C) = BB flattened batch elements
    N, C = x.shape
    H, HS, T = N_HEADS, HEADSIZE, BLOCKSIZE
    BB = N // T

    biases = bias_ref[...]                      # (4, 4C) packed small params
    bqkv = biases[0:1, 0:3 * C]                 # (1, 3C)  LN1-beta fold (q pre-scaled)
    bp   = biases[1:2, 0:C]                     # (1, C)   attention proj bias
    b1   = biases[2:3, 0:4 * C]                 # (1, 4C)  FF bias 1 (LN2-beta folded)
    b2   = biases[3:4, 0:C]                     # (1, C)   FF bias 2
    mask_bias = mask_ref[...]                   # (T, T) additive causal mask (0/NEG_INF)

    # ---- ln1 + fused QKV projection (gamma/beta and 1/sqrt(HS) folded host-side) ----
    h = _norm(x)                                                        # (N, C)
    qkv = jnp.dot(h, wqkv_ref[...],
                  preferred_element_type=jnp.float32) + bqkv            # (N, 3C)
    qkv = qkv.reshape(BB, T, 3 * C)            # cheap: T == sublane tile (8)

    # ---- multi-head causal attention; batch stays a dot_general batch dim ----
    head_outs = []
    for hd in range(H):
        q = qkv[:, :, hd * HS:(hd + 1) * HS]                            # (BB, T, HS)
        k = qkv[:, :, C + hd * HS:C + (hd + 1) * HS]
        v = qkv[:, :, 2 * C + hd * HS:2 * C + (hd + 1) * HS]
        s = jnp.einsum('bqd,bkd->bqk', q, k,
                       preferred_element_type=jnp.float32)              # (BB, T, T)
        s = s + mask_bias[None, :, :]
        s = s - jnp.max(s, axis=-1, keepdims=True)
        p = jnp.exp(s)
        p = p * pl.reciprocal(jnp.sum(p, axis=-1, keepdims=True), approx=True)  # EUP
        head_outs.append(jnp.einsum('bqk,bkd->bqd', p, v,
                                    preferred_element_type=jnp.float32))  # (BB, T, HS)

    o_cat = jnp.concatenate(head_outs, axis=-1).reshape(N, C)           # (N, C)
    attn = jnp.dot(o_cat, wp_ref[...], preferred_element_type=jnp.float32) + bp
    x1 = x + attn                                                        # residual 1

    # ---- ln2 + feed-forward (gamma/beta folded into w1/b1) ----
    h2 = _norm(x1)
    ff = jnp.dot(h2, w1_ref[...], preferred_element_type=jnp.float32) + b1
    ff = jnp.maximum(ff, 0.0)
    ff = jnp.dot(ff, w2_ref[...], preferred_element_type=jnp.float32) + b2

    o_ref[...] = x1 + ff                                                 # residual 2


def _pick_batch_block(B, T, target_rows=512):
    """Batches per grid step: aim for ~target_rows MXU rows, keep >= 2 grid steps
    (so both v7x TensorCores get work), and require BB | B."""
    cap = B // 2 if B >= 2 else 1
    cap = max(1, min(cap, max(1, target_rows // T)))
    for bb in range(cap, 0, -1):
        if B % bb == 0:
            return bb
    return 1


def pack_params(params):
    """Module-layout params -> consolidated, pre-folded kernel-layout slabs."""
    ln1g, ln1b, wq, wk, wv, wp, bp, ln2g, ln2b, w1, b1, w2, b2 = params
    C, HS, T = N_EMBD, HEADSIZE, BLOCKSIZE
    scale = HS ** -0.5

    g1 = ln1g.reshape(C, 1)
    beta1 = ln1b.reshape(1, C)
    g2 = ln2g.reshape(C, 1)
    beta2 = ln2b.reshape(1, C)

    # ln1(x) @ W == norm(x) @ (g1*W) + beta1 @ W ; 1/sqrt(HS) folded into q columns
    wqkv = jnp.concatenate([(g1 * wq) * scale, g1 * wk, g1 * wv], axis=1)        # (C, 3C)
    bqkv = jnp.concatenate([(beta1 @ wq) * scale, beta1 @ wk, beta1 @ wv], axis=1)  # (1, 3C)

    # ln2(x1) @ W1 + b1 == norm(x1) @ (g2*W1) + (beta2 @ W1 + b1)
    w1_eff = g2 * w1                                                     # (C, 4C)
    b1_eff = beta2 @ w1 + b1                                             # (1, 4C)

    # constant additive causal mask bias (grid-invariant -> hoisted out of the kernel)
    tri = np.tril(np.ones((T, T), np.float32))
    mask_bias = jnp.asarray(np.where(tri > 0.0, 0.0, NEG_INF), jnp.float32)      # (T, T)

    # pack small bias rows into one (4, 4C) slab (fewer DMA streams)
    W = 4 * C

    def pad_row(v):
        v = v.reshape(1, -1)
        return jnp.pad(v, ((0, 0), (0, W - v.shape[1])))

    bias_slab = jnp.concatenate(
        [pad_row(bqkv), pad_row(bp), pad_row(b1_eff), pad_row(b2)], axis=0)      # (4, 4C)

    return [mask_bias, wqkv, wp, w1_eff, w2, bias_slab]


def block_forward(x, params):
    B, T, C = x.shape
    assert T == BLOCKSIZE and C == N_EMBD
    packed = pack_params(params)
    BB = _pick_batch_block(B, T)
    rows = BB * T
    grid = (B // BB,)

    x2 = x.reshape(B * T, C)                   # flatten batch/sequence rows

    def const_spec(a):                         # bind ndim explicitly (no late binding)
        nd = a.ndim
        return pl.BlockSpec(a.shape, lambda g, _nd=nd: (0,) * _nd)

    out = pl.pallas_call(
        block_kernel,
        out_shape=jax.ShapeDtypeStruct((B * T, C), jnp.float32),
        grid_spec=pltpu.PrefetchScalarGridSpec(
            num_scalar_prefetch=0,
            grid=grid,
            in_specs=[pl.BlockSpec((rows, C), lambda g: (g, 0))]
                     + [const_spec(a) for a in packed],
            out_specs=pl.BlockSpec((rows, C), lambda g: (g, 0)),
        ),
        compiler_params=pltpu.CompilerParams(
            dimension_semantics=("parallel",)),
    )(x2, *packed)
    return out.reshape(B, T, C)


def make_params(key):
    C = N_EMBD
    ks = jax.random.split(key, 16)
    scale = 0.05
    wq = scale * jax.random.normal(ks[0], (C, C), jnp.float32)
    wk = scale * jax.random.normal(ks[1], (C, C), jnp.float32)
    wv = scale * jax.random.normal(ks[2], (C, C), jnp.float32)
    wp = scale * jax.random.normal(ks[3], (C, C), jnp.float32)
    bp = scale * jax.random.normal(ks[4], (1, C), jnp.float32)
    # non-trivial LayerNorm affine params so the host-side fold is actually exercised
    ln1g = 1.0 + 0.1 * jax.random.normal(ks[9], (1, C), jnp.float32)
    ln1b = 0.1 * jax.random.normal(ks[10], (1, C), jnp.float32)
    ln2g = 1.0 + 0.1 * jax.random.normal(ks[11], (1, C), jnp.float32)
    ln2b = 0.1 * jax.random.normal(ks[12], (1, C), jnp.float32)
    w1 = scale * jax.random.normal(ks[5], (C, 4 * C), jnp.float32)
    b1 = scale * jax.random.normal(ks[6], (1, 4 * C), jnp.float32)
    w2 = scale * jax.random.normal(ks[7], (4 * C, C), jnp.float32)
    b2 = scale * jax.random.normal(ks[8], (1, C), jnp.float32)
    return [ln1g, ln1b, wq, wk, wv, wp, bp, ln2g, ln2b, w1, b1, w2, b2]


def _layernorm_ref(v, g, b):
    mu = jnp.mean(v, axis=-1, keepdims=True)
    var = jnp.mean((v - mu) ** 2, axis=-1, keepdims=True)
    return (v - mu) * jax.lax.rsqrt(var + EPS) * g + b


def block_reference(x, params):
    """Pure-JAX reference mirroring the PyTorch module (dropout in eval mode)."""
    ln1g, ln1b, wq, wk, wv, wp, bp, ln2g, ln2b, w1, b1, w2, b2 = params
    h = _layernorm_ref(x, ln1g, ln1b)
    q = h @ wq
    k = h @ wk
    v = h @ wv
    T = x.shape[1]
    mask = jnp.tril(jnp.ones((T, T), bool))
    outs = []
    for hd in range(N_HEADS):
        lo = hd * HEADSIZE
        qh, kh, vh = q[..., lo:lo + HEADSIZE], k[..., lo:lo + HEADSIZE], v[..., lo:lo + HEADSIZE]
        s = jnp.einsum("btd,bsd->bts", qh, kh) * (HEADSIZE ** -0.5)
        s = jnp.where(mask, s, -jnp.inf)
        p = jax.nn.softmax(s, axis=-1)
        outs.append(jnp.einsum("bts,bsd->btd", p, vh))
    attn = jnp.concatenate(outs, axis=-1) @ wp + bp
    x1 = x + attn
    h2 = _layernorm_ref(x1, ln2g, ln2b)
    ff = jnp.maximum(h2 @ w1 + b1, 0.0) @ w2 + b2
    return x1 + ff


if __name__ == "__main__":
    key = jax.random.PRNGKey(0)
    kx, kp = jax.random.split(key)
    B, T, C = 2, BLOCKSIZE, N_EMBD
    x = jax.random.normal(kx, (B, T, C), jnp.float32)
    params = make_params(kp)

    out = jax.block_until_ready(block_forward(x, params))
    ref = block_reference(x, params)
    assert out.shape == (B, T, C)
    # approx softmax reciprocal costs ~1e-4 relative accuracy -> 1e-3 tolerance
    np.testing.assert_allclose(np.asarray(out), np.asarray(ref), atol=1e-3, rtol=1e-3)
    print("KERNEL_OK")
</pallas_src>

<mosaic_0001>
module attributes {stable_mosaic.version = 11 : i64} {
  func.func @block_kernel(%arg0: i32, %arg1: memref<8x32xf32, #tpu.memory_space<vmem>>, %arg2: memref<8x8xf32, #tpu.memory_space<vmem>>, %arg3: memref<32x96xf32, #tpu.memory_space<vmem>>, %arg4: memref<32x32xf32, #tpu.memory_space<vmem>>, %arg5: memref<32x128xf32, #tpu.memory_space<vmem>>, %arg6: memref<128x32xf32, #tpu.memory_space<vmem>>, %arg7: memref<4x128xf32, #tpu.memory_space<vmem>>, %arg8: memref<8x32xf32, #tpu.memory_space<vmem>>) attributes {dimension_semantics = [#tpu.dimension_semantics<parallel>], iteration_bounds = array<i64: 2>, scalar_prefetch = 0 : i64, scratch_operands = 0 : i64, tpu.core_type = #tpu.core_type<tc>, window_params = [{transform_indices = @transform_0, window_bounds = array<i64: 8, 32>}, {pipeline_mode = #tpu.pipeline_mode<synchronous>, transform_indices = @transform_1, window_bounds = array<i64: 8, 8>}, {pipeline_mode = #tpu.pipeline_mode<synchronous>, transform_indices = @transform_2, window_bounds = array<i64: 32, 96>}, {pipeline_mode = #tpu.pipeline_mode<synchronous>, transform_indices = @transform_3, window_bounds = array<i64: 32, 32>}, {pipeline_mode = #tpu.pipeline_mode<synchronous>, transform_indices = @transform_4, window_bounds = array<i64: 32, 128>}, {pipeline_mode = #tpu.pipeline_mode<synchronous>, transform_indices = @transform_5, window_bounds = array<i64: 128, 32>}, {pipeline_mode = #tpu.pipeline_mode<synchronous>, transform_indices = @transform_6, window_bounds = array<i64: 4, 128>}, {transform_indices = @transform_7, window_bounds = array<i64: 8, 32>}]} {
    %c0 = arith.constant 0 : index
    %c0_0 = arith.constant 0 : index
    %0 = vector.load %arg1[%c0, %c0_0] : memref<8x32xf32, #tpu.memory_space<vmem>>, vector<8x32xf32>
    %c0_1 = arith.constant 0 : index
    %c0_2 = arith.constant 0 : index
    %1 = vector.load %arg7[%c0_1, %c0_2] : memref<4x128xf32, #tpu.memory_space<vmem>>, vector<4x128xf32>
    %2 = vector.extract_strided_slice %1 {offsets = [0, 0], sizes = [1, 96], strides = [1, 1]} : vector<4x128xf32> to vector<1x96xf32>
    %3 = vector.extract_strided_slice %1 {offsets = [1, 0], sizes = [1, 32], strides = [1, 1]} : vector<4x128xf32> to vector<1x32xf32>
    %4 = vector.extract_strided_slice %1 {offsets = [2, 0], sizes = [1, 128], strides = [1, 1]} : vector<4x128xf32> to vector<1x128xf32>
    %5 = vector.extract_strided_slice %1 {offsets = [3, 0], sizes = [1, 32], strides = [1, 1]} : vector<4x128xf32> to vector<1x32xf32>
    %c0_3 = arith.constant 0 : index
    %c0_4 = arith.constant 0 : index
    %6 = vector.load %arg2[%c0_3, %c0_4] : memref<8x8xf32, #tpu.memory_space<vmem>>, vector<8x8xf32>
    %cst = arith.constant dense<0.000000e+00> : vector<8xf32>
    %7 = vector.multi_reduction <add>, %0, %cst [1] : vector<8x32xf32> to vector<8xf32>
    %8 = vector.shape_cast %7 : vector<8xf32> to vector<8x1xf32>
    %cst_5 = arith.constant 3.200000e+01 : f32
    %9 = vector.broadcast %cst_5 : f32 to vector<8x1xf32>
    %10 = arith.divf %8, %9 : vector<8x1xf32>
    %11 = vector.broadcast %10 : vector<8x1xf32> to vector<8x32xf32>
    %12 = arith.subf %0, %11 : vector<8x32xf32>
    %13 = arith.mulf %12, %12 : vector<8x32xf32>
    %cst_6 = arith.constant dense<0.000000e+00> : vector<8xf32>
    %14 = vector.multi_reduction <add>, %13, %cst_6 [1] : vector<8x32xf32> to vector<8xf32>
    %15 = vector.shape_cast %14 : vector<8xf32> to vector<8x1xf32>
    %cst_7 = arith.constant 3.200000e+01 : f32
    %16 = vector.broadcast %cst_7 : f32 to vector<8x1xf32>
    %17 = arith.divf %15, %16 : vector<8x1xf32>
    %18 = vector.broadcast %10 : vector<8x1xf32> to vector<8x32xf32>
    %19 = arith.subf %0, %18 : vector<8x32xf32>
    %cst_8 = arith.constant 9.99999974E-6 : f32
    %20 = vector.broadcast %cst_8 : f32 to vector<8x1xf32>
    %21 = arith.addf %17, %20 : vector<8x1xf32>
    %22 = math.rsqrt %21 : vector<8x1xf32>
    %23 = vector.broadcast %22 : vector<8x1xf32> to vector<8x32xf32>
    %24 = arith.mulf %19, %23 : vector<8x32xf32>
    %c0_9 = arith.constant 0 : index
    %c0_10 = arith.constant 0 : index
    %25 = vector.load %arg3[%c0_9, %c0_10] : memref<32x96xf32, #tpu.memory_space<vmem>>, vector<32x96xf32>
    %cst_11 = arith.constant dense<0.000000e+00> : vector<8x96xf32>
    %26 = tpu.matmul %24, %25, %cst_11 {dimension_numbers = #tpu.dot_dimension_numbers<[1], [0], [0], [1], [0, 0, 1, 1], [], []>} : vector<8x32xf32>, vector<32x96xf32>, vector<8x96xf32> -> vector<8x96xf32>
    %27 = vector.broadcast %2 : vector<1x96xf32> to vector<8x96xf32>
    %28 = arith.addf %26, %27 : vector<8x96xf32>
    %29 = vector.shape_cast %28 : vector<8x96xf32> to vector<1x8x96xf32>
    %30 = vector.extract_strided_slice %29 {offsets = [0, 0, 0], sizes = [1, 8, 8], strides = [1, 1, 1]} : vector<1x8x96xf32> to vector<1x8x8xf32>
    %31 = vector.extract_strided_slice %29 {offsets = [0, 0, 32], sizes = [1, 8, 8], strides = [1, 1, 1]} : vector<1x8x96xf32> to vector<1x8x8xf32>
    %32 = vector.extract_strided_slice %29 {offsets = [0, 0, 64], sizes = [1, 8, 8], strides = [1, 1, 1]} : vector<1x8x96xf32> to vector<1x8x8xf32>
    "tpu.trace_start"() <{level = 10 : i32, message = "bqd,bkd->bqk"}> : () -> ()
    %cst_12 = arith.constant dense<0.000000e+00> : vector<1x8x8xf32>
    %33 = tpu.matmul %30, %31, %cst_12 {dimension_numbers = #tpu.dot_dimension_numbers<[2], [2], [1], [1], [0, 0, 0, 1, 1, 1], [0], [0]>} : vector<1x8x8xf32>, vector<1x8x8xf32>, vector<1x8x8xf32> -> vector<1x8x8xf32>
    "tpu.trace_stop"() : () -> ()
    %34 = vector.shape_cast %6 : vector<8x8xf32> to vector<1x8x8xf32>
    %35 = arith.addf %33, %34 : vector<1x8x8xf32>
    %cst_13 = arith.constant dense<0xFF800000> : vector<1x8xf32>
    %36 = vector.multi_reduction <maximumf>, %35, %cst_13 [2] : vector<1x8x8xf32> to vector<1x8xf32>
    %37 = vector.shape_cast %36 : vector<1x8xf32> to vector<1x8x1xf32>
    %38 = vector.broadcast %37 : vector<1x8x1xf32> to vector<1x8x8xf32>
    %39 = arith.subf %35, %38 : vector<1x8x8xf32>
    %40 = math.exp %39 : vector<1x8x8xf32>
    %cst_14 = arith.constant dense<0.000000e+00> : vector<1x8xf32>
    %41 = vector.multi_reduction <add>, %40, %cst_14 [2] : vector<1x8x8xf32> to vector<1x8xf32>
    %42 = vector.shape_cast %41 : vector<1x8xf32> to vector<1x8x1xf32>
    %43 = tpu.reciprocal %42 {approx = true} : vector<1x8x1xf32> -> vector<1x8x1xf32>
    %44 = vector.broadcast %43 : vector<1x8x1xf32> to vector<1x8x8xf32>
    %45 = arith.mulf %40, %44 : vector<1x8x8xf32>
    "tpu.trace_start"() <{level = 10 : i32, message = "bqk,bkd->bqd"}> : () -> ()
    %cst_15 = arith.constant dense<0.000000e+00> : vector<1x8x8xf32>
    %46 = tpu.matmul %45, %32, %cst_15 {dimension_numbers = #tpu.dot_dimension_numbers<[2], [1], [1], [2], [0, 0, 0, 1, 1, 2], [0], [0]>} : vector<1x8x8xf32>, vector<1x8x8xf32>, vector<1x8x8xf32> -> vector<1x8x8xf32>
    "tpu.trace_stop"() : () -> ()
    %47 = vector.extract_strided_slice %29 {offsets = [0, 0, 8], sizes = [1, 8, 8], strides = [1, 1, 1]} : vector<1x8x96xf32> to vector<1x8x8xf32>
    %48 = vector.extract_strided_slice %29 {offsets = [0, 0, 40], sizes = [1, 8, 8], strides = [1, 1, 1]} : vector<1x8x96xf32> to vector<1x8x8xf32>
    %49 = vector.extract_strided_slice %29 {offsets = [0, 0, 72], sizes = [1, 8, 8], strides = [1, 1, 1]} : vector<1x8x96xf32> to vector<1x8x8xf32>
    "tpu.trace_start"() <{level = 10 : i32, message = "bqd,bkd->bqk"}> : () -> ()
    %cst_16 = arith.constant dense<0.000000e+00> : vector<1x8x8xf32>
    %50 = tpu.matmul %47, %48, %cst_16 {dimension_numbers = #tpu.dot_dimension_numbers<[2], [2], [1], [1], [0, 0, 0, 1, 1, 1], [0], [0]>} : vector<1x8x8xf32>, vector<1x8x8xf32>, vector<1x8x8xf32> -> vector<1x8x8xf32>
    "tpu.trace_stop"() : () -> ()
    %51 = vector.shape_cast %6 : vector<8x8xf32> to vector<1x8x8xf32>
    %52 = arith.addf %50, %51 : vector<1x8x8xf32>
    %cst_17 = arith.constant dense<0xFF800000> : vector<1x8xf32>
    %53 = vector.multi_reduction <maximumf>, %52, %cst_17 [2] : vector<1x8x8xf32> to vector<1x8xf32>
    %54 = vector.shape_cast %53 : vector<1x8xf32> to vector<1x8x1xf32>
    %55 = vector.broadcast %54 : vector<1x8x1xf32> to vector<1x8x8xf32>
    %56 = arith.subf %52, %55 : vector<1x8x8xf32>
    %57 = math.exp %56 : vector<1x8x8xf32>
    %cst_18 = arith.constant dense<0.000000e+00> : vector<1x8xf32>
    %58 = vector.multi_reduction <add>, %57, %cst_18 [2] : vector<1x8x8xf32> to vector<1x8xf32>
    %59 = vector.shape_cast %58 : vector<1x8xf32> to vector<1x8x1xf32>
    %60 = tpu.reciprocal %59 {approx = true} : vector<1x8x1xf32> -> vector<1x8x1xf32>
    %61 = vector.broadcast %60 : vector<1x8x1xf32> to vector<1x8x8xf32>
    %62 = arith.mulf %57, %61 : vector<1x8x8xf32>
    "tpu.trace_start"() <{level = 10 : i32, message = "bqk,bkd->bqd"}> : () -> ()
    %cst_19 = arith.constant dense<0.000000e+00> : vector<1x8x8xf32>
    %63 = tpu.matmul %62, %49, %cst_19 {dimension_numbers = #tpu.dot_dimension_numbers<[2], [1], [1], [2], [0, 0, 0, 1, 1, 2], [0], [0]>} : vector<1x8x8xf32>, vector<1x8x8xf32>, vector<1x8x8xf32> -> vector<1x8x8xf32>
    "tpu.trace_stop"() : () -> ()
    %64 = vector.extract_strided_slice %29 {offsets = [0, 0, 16], sizes = [1, 8, 8], strides = [1, 1, 1]} : vector<1x8x96xf32> to vector<1x8x8xf32>
    %65 = vector.extract_strided_slice %29 {offsets = [0, 0, 48], sizes = [1, 8, 8], strides = [1, 1, 1]} : vector<1x8x96xf32> to vector<1x8x8xf32>
    %66 = vector.extract_strided_slice %29 {offsets = [0, 0, 80], sizes = [1, 8, 8], strides = [1, 1, 1]} : vector<1x8x96xf32> to vector<1x8x8xf32>
    "tpu.trace_start"() <{level = 10 : i32, message = "bqd,bkd->bqk"}> : () -> ()
    %cst_20 = arith.constant dense<0.000000e+00> : vector<1x8x8xf32>
    %67 = tpu.matmul %64, %65, %cst_20 {dimension_numbers = #tpu.dot_dimension_numbers<[2], [2], [1], [1], [0, 0, 0, 1, 1, 1], [0], [0]>} : vector<1x8x8xf32>, vector<1x8x8xf32>, vector<1x8x8xf32> -> vector<1x8x8xf32>
    "tpu.trace_stop"() : () -> ()
    %68 = vector.shape_cast %6 : vector<8x8xf32> to vector<1x8x8xf32>
    %69 = arith.addf %67, %68 : vector<1x8x8xf32>
    %cst_21 = arith.constant dense<0xFF800000> : vector<1x8xf32>
    %70 = vector.multi_reduction <maximumf>, %69, %cst_21 [2] : vector<1x8x8xf32> to vector<1x8xf32>
    %71 = vector.shape_cast %70 : vector<1x8xf32> to vector<1x8x1xf32>
    %72 = vector.broadcast %71 : vector<1x8x1xf32> to vector<1x8x8xf32>
    %73 = arith.subf %69, %72 : vector<1x8x8xf32>
    %74 = math.exp %73 : vector<1x8x8xf32>
    %cst_22 = arith.constant dense<0.000000e+00> : vector<1x8xf32>
    %75 = vector.multi_reduction <add>, %74, %cst_22 [2] : vector<1x8x8xf32> to vector<1x8xf32>
    %76 = vector.shape_cast %75 : vector<1x8xf32> to vector<1x8x1xf32>
    %77 = tpu.reciprocal %76 {approx = true} : vector<1x8x1xf32> -> vector<1x8x1xf32>
    %78 = vector.broadcast %77 : vector<1x8x1xf32> to vector<1x8x8xf32>
    %79 = arith.mulf %74, %78 : vector<1x8x8xf32>
    "tpu.trace_start"() <{level = 10 : i32, message = "bqk,bkd->bqd"}> : () -> ()
    %cst_23 = arith.constant dense<0.000000e+00> : vector<1x8x8xf32>
    %80 = tpu.matmul %79, %66, %cst_23 {dimension_numbers = #tpu.dot_dimension_numbers<[2], [1], [1], [2], [0, 0, 0, 1, 1, 2], [0], [0]>} : vector<1x8x8xf32>, vector<1x8x8xf32>, vector<1x8x8xf32> -> vector<1x8x8xf32>
    "tpu.trace_stop"() : () -> ()
    %81 = vector.extract_strided_slice %29 {offsets = [0, 0, 24], sizes = [1, 8, 8], strides = [1, 1, 1]} : vector<1x8x96xf32> to vector<1x8x8xf32>
    %82 = vector.extract_strided_slice %29 {offsets = [0, 0, 56], sizes = [1, 8, 8], strides = [1, 1, 1]} : vector<1x8x96xf32> to vector<1x8x8xf32>
    %83 = vector.extract_strided_slice %29 {offsets = [0, 0, 88], sizes = [1, 8, 8], strides = [1, 1, 1]} : vector<1x8x96xf32> to vector<1x8x8xf32>
    "tpu.trace_start"() <{level = 10 : i32, message = "bqd,bkd->bqk"}> : () -> ()
    %cst_24 = arith.constant dense<0.000000e+00> : vector<1x8x8xf32>
    %84 = tpu.matmul %81, %82, %cst_24 {dimension_numbers = #tpu.dot_dimension_numbers<[2], [2], [1], [1], [0, 0, 0, 1, 1, 1], [0], [0]>} : vector<1x8x8xf32>, vector<1x8x8xf32>, vector<1x8x8xf32> -> vector<1x8x8xf32>
    "tpu.trace_stop"() : () -> ()
    %85 = vector.shape_cast %6 : vector<8x8xf32> to vector<1x8x8xf32>
    %86 = arith.addf %84, %85 : vector<1x8x8xf32>
    %cst_25 = arith.constant dense<0xFF800000> : vector<1x8xf32>
    %87 = vector.multi_reduction <maximumf>, %86, %cst_25 [2] : vector<1x8x8xf32> to vector<1x8xf32>
    %88 = vector.shape_cast %87 : vector<1x8xf32> to vector<1x8x1xf32>
    %89 = vector.broadcast %88 : vector<1x8x1xf32> to vector<1x8x8xf32>
    %90 = arith.subf %86, %89 : vector<1x8x8xf32>
    %91 = math.exp %90 : vector<1x8x8xf32>
    %cst_26 = arith.constant dense<0.000000e+00> : vector<1x8xf32>
    %92 = vector.multi_reduction <add>, %91, %cst_26 [2] : vector<1x8x8xf32> to vector<1x8xf32>
    %93 = vector.shape_cast %92 : vector<1x8xf32> to vector<1x8x1xf32>
    %94 = tpu.reciprocal %93 {approx = true} : vector<1x8x1xf32> -> vector<1x8x1xf32>
    %95 = vector.broadcast %94 : vector<1x8x1xf32> to vector<1x8x8xf32>
    %96 = arith.mulf %91, %95 : vector<1x8x8xf32>
    "tpu.trace_start"() <{level = 10 : i32, message = "bqk,bkd->bqd"}> : () -> ()
    %cst_27 = arith.constant dense<0.000000e+00> : vector<1x8x8xf32>
    %97 = tpu.matmul %96, %83, %cst_27 {dimension_numbers = #tpu.dot_dimension_numbers<[2], [1], [1], [2], [0, 0, 0, 1, 1, 2], [0], [0]>} : vector<1x8x8xf32>, vector<1x8x8xf32>, vector<1x8x8xf32> -> vector<1x8x8xf32>
    "tpu.trace_stop"() : () -> ()
    %98 = tpu.concatenate %46, %63, %80, %97 in 2 : vector<1x8x8xf32>, vector<1x8x8xf32>, vector<1x8x8xf32>, vector<1x8x8xf32> -> vector<1x8x32xf32>
    %99 = vector.shape_cast %98 : vector<1x8x32xf32> to vector<8x32xf32>
    %c0_28 = arith.constant 0 : index
    %c0_29 = arith.constant 0 : index
    %100 = vector.load %arg4[%c0_28, %c0_29] : memref<32x32xf32, #tpu.memory_space<vmem>>, vector<32x32xf32>
    %cst_30 = arith.constant dense<0.000000e+00> : vector<8x32xf32>
    %101 = tpu.matmul %99, %100, %cst_30 {dimension_numbers = #tpu.dot_dimension_numbers<[1], [0], [0], [1], [0, 0, 1, 1], [], []>} : vector<8x32xf32>, vector<32x32xf32>, vector<8x32xf32> -> vector<8x32xf32>
    %102 = vector.broadcast %3 : vector<1x32xf32> to vector<8x32xf32>
    %103 = arith.addf %101, %102 : vector<8x32xf32>
    %104 = arith.addf %0, %103 : vector<8x32xf32>
    %cst_31 = arith.constant dense<0.000000e+00> : vector<8xf32>
    %105 = vector.multi_reduction <add>, %104, %cst_31 [1] : vector<8x32xf32> to vector<8xf32>
    %106 = vector.shape_cast %105 : vector<8xf32> to vector<8x1xf32>
    %cst_32 = arith.constant 3.200000e+01 : f32
    %107 = vector.broadcast %cst_32 : f32 to vector<8x1xf32>
    %108 = arith.divf %106, %107 : vector<8x1xf32>
    %109 = vector.broadcast %108 : vector<8x1xf32> to vector<8x32xf32>
    %110 = arith.subf %104, %109 : vector<8x32xf32>
    %111 = arith.mulf %110, %110 : vector<8x32xf32>
    %cst_33 = arith.constant dense<0.000000e+00> : vector<8xf32>
    %112 = vector.multi_reduction <add>, %111, %cst_33 [1] : vector<8x32xf32> to vector<8xf32>
    %113 = vector.shape_cast %112 : vector<8xf32> to vector<8x1xf32>
    %cst_34 = arith.constant 3.200000e+01 : f32
    %114 = vector.broadcast %cst_34 : f32 to vector<8x1xf32>
    %115 = arith.divf %113, %114 : vector<8x1xf32>
    %116 = vector.broadcast %108 : vector<8x1xf32> to vector<8x32xf32>
    %117 = arith.subf %104, %116 : vector<8x32xf32>
    %cst_35 = arith.constant 9.99999974E-6 : f32
    %118 = vector.broadcast %cst_35 : f32 to vector<8x1xf32>
    %119 = arith.addf %115, %118 : vector<8x1xf32>
    %120 = math.rsqrt %119 : vector<8x1xf32>
    %121 = vector.broadcast %120 : vector<8x1xf32> to vector<8x32xf32>
    %122 = arith.mulf %117, %121 : vector<8x32xf32>
    %c0_36 = arith.constant 0 : index
    %c0_37 = arith.constant 0 : index
    %123 = vector.load %arg5[%c0_36, %c0_37] : memref<32x128xf32, #tpu.memory_space<vmem>>, vector<32x128xf32>
    %cst_38 = arith.constant dense<0.000000e+00> : vector<8x128xf32>
    %124 = tpu.matmul %122, %123, %cst_38 {dimension_numbers = #tpu.dot_dimension_numbers<[1], [0], [0], [1], [0, 0, 1, 1], [], []>} : vector<8x32xf32>, vector<32x128xf32>, vector<8x128xf32> -> vector<8x128xf32>
    %125 = vector.broadcast %4 : vector<1x128xf32> to vector<8x128xf32>
    %126 = arith.addf %124, %125 : vector<8x128xf32>
    %cst_39 = arith.constant 0.000000e+00 : f32
    %127 = vector.broadcast %cst_39 : f32 to vector<8x128xf32>
    %128 = arith.maximumf %126, %127 : vector<8x128xf32>
    %c0_40 = arith.constant 0 : index
    %c0_41 = arith.constant 0 : index
    %129 = vector.load %arg6[%c0_40, %c0_41] : memref<128x32xf32, #tpu.memory_space<vmem>>, vector<128x32xf32>
    %cst_42 = arith.constant dense<0.000000e+00> : vector<8x32xf32>
    %130 = tpu.matmul %128, %129, %cst_42 {dimension_numbers = #tpu.dot_dimension_numbers<[1], [0], [0], [1], [0, 0, 1, 1], [], []>} : vector<8x128xf32>, vector<128x32xf32>, vector<8x32xf32> -> vector<8x32xf32>
    %131 = vector.broadcast %5 : vector<1x32xf32> to vector<8x32xf32>
    %132 = arith.addf %130, %131 : vector<8x32xf32>
    %133 = arith.addf %104, %132 : vector<8x32xf32>
    %c0_43 = arith.constant 0 : index
    %c0_44 = arith.constant 0 : index
    %134 = vector.load %arg8[%c0_43, %c0_44] : memref<8x32xf32, #tpu.memory_space<vmem>>, vector<8x32xf32>
    tpu.vector_store %arg8[%c0_43, %c0_44], %133 {strides = array<i32>} : memref<8x32xf32, #tpu.memory_space<vmem>>, vector<8x32xf32>,
    return
  }
  func.func @transform_0(%arg0: i32) -> (i32, i32) {
    %c0_i32 = arith.constant 0 : i32
    %c0_i32_0 = arith.constant 0 : i32
    return %arg0, %c0_i32 : i32, i32
  }
  func.func @transform_1(%arg0: i32) -> (i32, i32) {
    %c0_i32 = arith.constant 0 : i32
    %c0_i32_0 = arith.constant 0 : i32
    %c0_i32_1 = arith.constant 0 : i32
    return %c0_i32, %c0_i32_0 : i32, i32
  }
  func.func @transform_2(%arg0: i32) -> (i32, i32) {
    %c0_i32 = arith.constant 0 : i32
    %c0_i32_0 = arith.constant 0 : i32
    %c0_i32_1 = arith.constant 0 : i32
    return %c0_i32, %c0_i32_0 : i32, i32
  }
  func.func @transform_3(%arg0: i32) -> (i32, i32) {
    %c0_i32 = arith.constant 0 : i32
    %c0_i32_0 = arith.constant 0 : i32
    %c0_i32_1 = arith.constant 0 : i32
    return %c0_i32, %c0_i32_0 : i32, i32
  }
  func.func @transform_4(%arg0: i32) -> (i32, i32) {
    %c0_i32 = arith.constant 0 : i32
    %c0_i32_0 = arith.constant 0 : i32
    %c0_i32_1 = arith.constant 0 : i32
    return %c0_i32, %c0_i32_0 : i32, i32
  }
  func.func @transform_5(%arg0: i32) -> (i32, i32) {
    %c0_i32 = arith.constant 0 : i32
    %c0_i32_0 = arith.constant 0 : i32
    %c0_i32_1 = arith.constant 0 : i32
    return %c0_i32, %c0_i32_0 : i32, i32
  }
  func.func @transform_6(%arg0: i32) -> (i32, i32) {
    %c0_i32 = arith.constant 0 : i32
    %c0_i32_0 = arith.constant 0 : i32
    %c0_i32_1 = arith.constant 0 : i32
    return %c0_i32, %c0_i32_0 : i32, i32
  }
  func.func @transform_7(%arg0: i32) -> (i32, i32) {
    %c0_i32 = arith.constant 0 : i32
    %c0_i32_0 = arith.constant 0 : i32
    return %arg0, %c0_i32 : i32, i32
  }
}

</mosaic_0001>

<llo_original>
// kernel: tpu_custom_call.1
$region0: #{tpu_custom_call.1}
  #allocation0 [shape = 'u32[]', space=smem, size = 0x4, offset = 0x4, fixed_abs, tag = 'smem constant byte address 0x4 - core index']
  #allocation1 [shape = 'u32[144,128]{1,0:T(1,128)}', space=vmem, size = 0x12000, scoped, tag = 'internal scratch']
  %s0 = inlined_call_operand.vmem [shape: f32[16,32], index: 0, kind: input, shape index: {}]
  %s1 = inlined_call_operand.vmem [shape: f32[8,8], index: 1, kind: input, shape index: {}]
  %s2 = inlined_call_operand.vmem [shape: f32[32,96], index: 2, kind: input, shape index: {}]
  %s3 = inlined_call_operand.vmem [shape: f32[32,32], index: 3, kind: input, shape index: {}]
  %s4 = inlined_call_operand.vmem [shape: f32[32,128], index: 4, kind: input, shape index: {}]
  %s5 = inlined_call_operand.vmem [shape: f32[128,32], index: 5, kind: input, shape index: {}]
  %s6 = inlined_call_operand.vmem [shape: f32[4,128], index: 6, kind: input, shape index: {}]
  %s7 = inlined_call_operand.hbm [shape: f32[16,32], index: 7, kind: output, shape index: {}]
  %s8 = sld [smem:[#allocation0]]
  $region61: #{tpu_custom_call.1} parent=0
    _
  %s10 = ssub.s32 1, %s8
  %s11 = scalar_select 0, %s10, %s8
  $region1: #{tpu_custom_call.1} parent=0
    #allocation2 [shape = 'u8[8192]{0}', space=vmem, size = 0x2000, scoped, tag = 'output window, operand 0']
    #allocation3 [shape = 's32[2]{0}', space=sflag, size = 0x8, scoped, tag = 'scoped memory for tpu_custom_call.1']
    %12 = vsyncpa [#allocation3], 0
    %s13 = scalar_lea.sflag [#allocation3], 1
    %14 = vsyncpa %s13, 0
    loop: start=0, step=1, limit=4
    $region2: #{tpu_custom_call.1} parent=1 // loop_pre_header
      _
    $region3: #{tpu_custom_call.1} parent=1 // loop_header
      %s16 = sphi 0, %s20
      %p17 = scmp.ge.s32.totalorder %s16, 4
      %s26 = sphi 0, %s28
      %s29 = sphi 0, %s26
      %s30 = sphi 0, %s29
      %s46 = sphi 0, %s30
      %s50 = sphi 0, %s50
      %s52 = sphi 0, %s50
      %s53 = sphi 0, %s52
      %s67 = sphi 0, %s53
      %s71 = sphi 0, %s71
      %s73 = sphi 0, %s71
      %s74 = sphi 0, %s73
      %s88 = sphi 0, %s74
      %s92 = sphi 0, %s92
      %s94 = sphi 0, %s92
      %s95 = sphi 0, %s94
      %s109 = sphi 0, %s95
      %s113 = sphi 0, %s113
      %s115 = sphi 0, %s113
      %s116 = sphi 0, %s115
      %s130 = sphi 0, %s116
      %s134 = sphi 0, %s134
      %s136 = sphi 0, %s134
      %s137 = sphi 0, %s136
      %s151 = sphi 0, %s137
      %s155 = sphi 0, %s155
      %s157 = sphi 0, %s155
      %s158 = sphi 0, %s157
      %s172 = sphi 0, %s158
      %s178 = sphi 0, %s180
      %s181 = sphi 0, %s178
      %s182 = sphi 0, %s181
      %s198 = sphi 0, %s182
    $region4: #{tpu_custom_call.1} parent=1 // loop_header_branch
      %19 = sbr.rel (%p17) target = $region8
    $region5: #{tpu_custom_call.1} parent=1 // loop_body
      %s21 = ssub.s32 %s16, 1
      %s22 = ssub.s32 %s16, 2
      %s23 = sadd.s32 %s16, 1
      %s24 = ssub.s32 %s16, %s23
      %p25 = scmp.eq.s32.totalorder %s24, 0
      %s27 = sadd.s32 %s26, 1
      %s28 = scalar_select %p25, %s26, %s27
      %p31 = pneg %p25
      %p32 = scmp.eq.s32.totalorder %s16, 1
      %p33 = por %p31, %p32
      %p34 = scmp.ne.s32.totalorder %s26, %s29
      %p35 = scmp.eq.s32.totalorder %s16, 0
      %p36 = por %p34, %p35
      %p37 = scmp.ne.s32.totalorder %s26, %s29
      %p38 = scmp.eq.s32.totalorder %s21, 1
      %p39 = por %p37, %p38
      %p40 = scmp.ne.s32.totalorder %s29, %s30
      %p41 = scmp.eq.s32.totalorder %s21, 0
      %p42 = por %p40, %p41
      %p43 = scmp.ne.s32.totalorder %s29, %s30
      %p44 = scmp.eq.s32.totalorder %s22, 1
      %p45 = por %p43, %p44
      %p47 = scmp.ne.s32.totalorder %s30, %s46
      %p48 = scmp.eq.s32.totalorder %s22, 0
      %p49 = por %p47, %p48
      %s51 = sadd.s32 %s50, 1
      %p54 = scmp.eq.s32.totalorder %s16, 1
      %p55 = scmp.ne.s32.totalorder %s50, %s52
      %p56 = scmp.eq.s32.totalorder %s16, 0
      %p57 = por %p55, %p56
      %p58 = scmp.ne.s32.totalorder %s50, %s52
      %p59 = scmp.eq.s32.totalorder %s21, 1
      %p60 = por %p58, %p59
      %p61 = scmp.ne.s32.totalorder %s52, %s53
      %p62 = scmp.eq.s32.totalorder %s21, 0
      %p63 = por %p61, %p62
      %p64 = scmp.ne.s32.totalorder %s52, %s53
      %p65 = scmp.eq.s32.totalorder %s22, 1
      %p66 = por %p64, %p65
      %p68 = scmp.ne.s32.totalorder %s53, %s67
      %p69 = scmp.eq.s32.totalorder %s22, 0
      %p70 = por %p68, %p69
      %s72 = sadd.s32 %s71, 1
      %p75 = scmp.eq.s32.totalorder %s16, 1
      %p76 = scmp.ne.s32.totalorder %s71, %s73
      %p77 = scmp.eq.s32.totalorder %s16, 0
      %p78 = por %p76, %p77
      %p79 = scmp.ne.s32.totalorder %s71, %s73
      %p80 = scmp.eq.s32.totalorder %s21, 1
      %p81 = por %p79, %p80
      %p82 = scmp.ne.s32.totalorder %s73, %s74
      %p83 = scmp.eq.s32.totalorder %s21, 0
      %p84 = por %p82, %p83
      %p85 = scmp.ne.s32.totalorder %s73, %s74
      %p86 = scmp.eq.s32.totalorder %s22, 1
      %p87 = por %p85, %p86
      %p89 = scmp.ne.s32.totalorder %s74, %s88
      %p90 = scmp.eq.s32.totalorder %s22, 0
      %p91 = por %p89, %p90
      %s93 = sadd.s32 %s92, 1
      %p96 = scmp.eq.s32.totalorder %s16, 1
      %p97 = scmp.ne.s32.totalorder %s92, %s94
      %p98 = scmp.eq.s32.totalorder %s16, 0
      %p99 = por %p97, %p98
      %p100 = scmp.ne.s32.totalorder %s92, %s94
      %p101 = scmp.eq.s32.totalorder %s21, 1
      %p102 = por %p100, %p101
      %p103 = scmp.ne.s32.totalorder %s94, %s95
      %p104 = scmp.eq.s32.totalorder %s21, 0
      %p105 = por %p103, %p104
      %p106 = scmp.ne.s32.totalorder %s94, %s95
      %p107 = scmp.eq.s32.totalorder %s22, 1
      %p108 = por %p106, %p107
      %p110 = scmp.ne.s32.totalorder %s95, %s109
      %p111 = scmp.eq.s32.totalorder %s22, 0
      %p112 = por %p110, %p111
      %s114 = sadd.s32 %s113, 1
      %p117 = scmp.eq.s32.totalorder %s16, 1
      %p118 = scmp.ne.s32.totalorder %s113, %s115
      %p119 = scmp.eq.s32.totalorder %s16, 0
      %p120 = por %p118, %p119
      %p121 = scmp.ne.s32.totalorder %s113, %s115
      %p122 = scmp.eq.s32.totalorder %s21, 1
      %p123 = por %p121, %p122
      %p124 = scmp.ne.s32.totalorder %s115, %s116
      %p125 = scmp.eq.s32.totalorder %s21, 0
      %p126 = por %p124, %p125
      %p127 = scmp.ne.s32.totalorder %s115, %s116
      %p128 = scmp.eq.s32.totalorder %s22, 1
      %p129 = por %p127, %p128
      %p131 = scmp.ne.s32.totalorder %s116, %s130
      %p132 = scmp.eq.s32.totalorder %s22, 0
      %p133 = por %p131, %p132
      %s135 = sadd.s32 %s134, 1
      %p138 = scmp.eq.s32.totalorder %s16, 1
      %p139 = scmp.ne.s32.totalorder %s134, %s136
      %p140 = scmp.eq.s32.totalorder %s16, 0
      %p141 = por %p139, %p140
      %p142 = scmp.ne.s32.totalorder %s134, %s136
      %p143 = scmp.eq.s32.totalorder %s21, 1
      %p144 = por %p142, %p143
      %p145 = scmp.ne.s32.totalorder %s136, %s137
      %p146 = scmp.eq.s32.totalorder %s21, 0
      %p147 = por %p145, %p146
      %p148 = scmp.ne.s32.totalorder %s136, %s137
      %p149 = scmp.eq.s32.totalorder %s22, 1
      %p150 = por %p148, %p149
      %p152 = scmp.ne.s32.totalorder %s137, %s151
      %p153 = scmp.eq.s32.totalorder %s22, 0
      %p154 = por %p152, %p153
      %s156 = sadd.s32 %s155, 1
      %p159 = scmp.eq.s32.totalorder %s16, 1
      %p160 = scmp.ne.s32.totalorder %s155, %s157
      %p161 = scmp.eq.s32.totalorder %s16, 0
      %p162 = por %p160, %p161
      %p163 = scmp.ne.s32.totalorder %s155, %s157
      %p164 = scmp.eq.s32.totalorder %s21, 1
      %p165 = por %p163, %p164
      %p166 = scmp.ne.s32.totalorder %s157, %s158
      %p167 = scmp.eq.s32.totalorder %s21, 0
      %p168 = por %p166, %p167
      %p169 = scmp.ne.s32.totalorder %s157, %s158
      %p170 = scmp.eq.s32.totalorder %s22, 1
      %p171 = por %p169, %p170
      %p173 = scmp.ne.s32.totalorder %s158, %s172
      %p174 = scmp.eq.s32.totalorder %s22, 0
      %p175 = por %p173, %p174
      %s176 = ssub.s32 %s16, %s23
      %p177 = scmp.eq.s32.totalorder %s176, 0
      %s179 = sadd.s32 %s178, 1
      %s180 = scalar_select %p177, %s178, %s179
      %p183 = pneg %p177
      %p184 = scmp.eq.s32.totalorder %s16, 1
      %p185 = por %p183, %p184
      %p186 = scmp.ne.s32.totalorder %s178, %s181
      %p187 = scmp.eq.s32.totalorder %s16, 0
      %p188 = por %p186, %p187
      %p189 = scmp.ne.s32.totalorder %s178, %s181
      %p190 = scmp.eq.s32.totalorder %s21, 1
      %p191 = por %p189, %p190
      %p192 = scmp.ne.s32.totalorder %s181, %s182
      %p193 = scmp.eq.s32.totalorder %s21, 0
      %p194 = por %p192, %p193
      %p195 = scmp.ne.s32.totalorder %s181, %s182
      %p196 = scmp.eq.s32.totalorder %s22, 1
      %p197 = por %p195, %p196
      %p199 = scmp.ne.s32.totalorder %s182, %s198
      %p200 = scmp.eq.s32.totalorder %s22, 0
      %p201 = por %p199, %p200
      %p202 = scmp.le.s32.totalorder 1, %s16
      %p203 = scmp.lt.s32.totalorder %s16, 3
      %p204 = pnand %p202, %p203
      %p205 = pneg %p204
      // Predicated region
      $region9: #{tpu_custom_call.1} parent=5 // pred_check
        _
      $region10: #{tpu_custom_call.1} parent=5 // pred_check_branch
        %207 = sbr.rel (%p204) target = $region12
      $region11: #{tpu_custom_call.1} parent=5 // pred_region
        %s208 = ssub.s32 %s16, 1
        // Predicated region
        $region13: #{tpu_custom_call.1} parent=11 // pred_check
          %p209 = pneg %p63
        $region14: #{tpu_custom_call.1} parent=11 // pred_check_branch
          %211 = sbr.rel (%p209) target = $region16
        $region15: #{tpu_custom_call.1} parent=11 // pred_region
          _
        $region16: #{tpu_custom_call.1} parent=11 // pred_fallthru
          _
        // Predicated region
        $region17: #{tpu_custom_call.1} parent=11 // pred_check
          %p212 = pneg %p84
        $region18: #{tpu_custom_call.1} parent=11 // pred_check_branch
          %214 = sbr.rel (%p212) target = $region20
        $region19: #{tpu_custom_call.1} parent=11 // pred_region
          _
        $region20: #{tpu_custom_call.1} parent=11 // pred_fallthru
          _
        // Predicated region
        $region21: #{tpu_custom_call.1} parent=11 // pred_check
          %p215 = pneg %p105
        $region22: #{tpu_custom_call.1} parent=11 // pred_check_branch
          %217 = sbr.rel (%p215) target = $region24
        $region23: #{tpu_custom_call.1} parent=11 // pred_region
          _
        $region24: #{tpu_custom_call.1} parent=11 // pred_fallthru
          _
        // Predicated region
        $region25: #{tpu_custom_call.1} parent=11 // pred_check
          %p218 = pneg %p126
        $region26: #{tpu_custom_call.1} parent=11 // pred_check_branch
          %220 = sbr.rel (%p218) target = $region28
        $region27: #{tpu_custom_call.1} parent=11 // pred_region
          _
        $region28: #{tpu_custom_call.1} parent=11 // pred_fallthru
          _
        // Predicated region
        $region29: #{tpu_custom_call.1} parent=11 // pred_check
          %p221 = pneg %p147
        $region30: #{tpu_custom_call.1} parent=11 // pred_check_branch
          %223 = sbr.rel (%p221) target = $region32
        $region31: #{tpu_custom_call.1} parent=11 // pred_region
          _
        $region32: #{tpu_custom_call.1} parent=11 // pred_fallthru
          _
        // Predicated region
        $region33: #{tpu_custom_call.1} parent=11 // pred_check
          %p224 = pneg %p168
        $region34: #{tpu_custom_call.1} parent=11 // pred_check_branch
          %226 = sbr.rel (%p224) target = $region36
        $region35: #{tpu_custom_call.1} parent=11 // pred_region
          _
        $region36: #{tpu_custom_call.1} parent=11 // pred_fallthru
          _
      $region12: #{tpu_custom_call.1} parent=5 // pred_fallthru
        _
      %p227 = scmp.lt.s32.totalorder %s16, 2
      // Predicated region
      $region37: #{tpu_custom_call.1} parent=5 // pred_check
        %p228 = pneg %p227
      $region38: #{tpu_custom_call.1} parent=5 // pred_check_branch
        %230 = sbr.rel (%p228) target = $region40
      $region39: #{tpu_custom_call.1} parent=5 // pred_region
        // Predicated region
        $region41: #{tpu_custom_call.1} parent=39 // pred_check
          %p231 = pneg %p36
        $region42: #{tpu_custom_call.1} parent=39 // pred_check_branch
          %233 = sbr.rel (%p231) target = $region44
        $region43: #{tpu_custom_call.1} parent=39 // pred_region
          %p234 = scmp.lt.s32.totalorder %s16, 1
          %s235 = scalar_select %p234, %s16, 1
          %s236 = smul.addr %s235, 8
          %s237 = scalar_lea.vmem %s0, %s236
        $region44: #{tpu_custom_call.1} parent=39 // pred_fallthru
          _
      $region40: #{tpu_custom_call.1} parent=5 // pred_fallthru
        _
      %p238 = scmp.le.s32.totalorder 1, %s16
      %p239 = scmp.lt.s32.totalorder %s16, 3
      %p240 = pnand %p238, %p239
      %p241 = pneg %p240
      // Predicated region
      $region45: #{tpu_custom_call.1} parent=5 // pred_check
        _
      $region46: #{tpu_custom_call.1} parent=5 // pred_check_branch
        %243 = sbr.rel (%p240) target = $region48
      $region47: #{tpu_custom_call.1} parent=5 // pred_region
        %s244 = ssub.s32 %s16, 1
        %p245 = scmp.lt.s32.totalorder %s21, 1
        %s246 = scalar_select %p245, %s21, 1
        %s247 = smul.addr %s246, 8
        %s248 = scalar_lea.vmem %s0, %s247
        %p249 = pneg %p42
        %p250 = pneg %p39
        %p251 = pneg %p63
        %p252 = pneg %p60
        %p253 = pneg %p84
        %p254 = pneg %p81
        %p255 = pneg %p105
        %p256 = pneg %p102
        %p257 = pneg %p126
        %p258 = pneg %p123
        %p259 = pneg %p147
        %p260 = pneg %p144
        %p261 = pneg %p168
        %p262 = pneg %p165
        %p263 = pneg %p194
        %p264 = pneg %p191
        %s265 = sand.u32 %s181, 1
        %s266 = scalar_lea.sflag [#allocation3], %s265
        %s267 = sand.u32 %s181, 1
        %s268 = smul.addr %s267, 8
        %s269 = scalar_lea.vmem [#allocation2], %s268
        %p270 = scmp.lt.s32.totalorder %s21, 1
        %s271 = scalar_select %p270, %s21, 1
        %s272 = smul.addr %s271, 8
        %s273 = scalar_lea.vmem %s0, %s272
        %v274 = vld [vmem:[%s273] sm:$0xff]
        %v275 = vld [vmem:[%s6] sm:$0xf]
        %v276 = vld [vmem:[%s1] sm:$0xff]
        %vm277 = vcmask 261120
        %v278 = vsel %vm277, %v274, 0.0
        %279 = vadd.xlane.f32.xlu0 %v278
        %v280 = vpop.xlane.xlu0 %279
        %v281 = vrcp.pop 32.0
        %v282 = vmul.f32 %v280, %v281
        %v283 = vsub.f32 %v274, %v282
        %v284 = vmul.f32 %v283, %v283
        %v285 = vsel %vm277, %v284, 0.0
        %286 = vadd.xlane.f32.xlu0 %v285
        %v287 = vpop.xlane.xlu0 %286
        %v288 = vmul.f32 %v287, %v281
        %v289 = vadd.f32 %v288, 1e-05
        %v290 = vrsqrt.pop %v289
        %v291 = vmul.f32 %v283, %v290
        %v292 = vld [vmem:[%s2] sm:$0xff]
        %v293 = vld [vmem:[%s2 + $0x8] sm:$0xff]
        %v294 = vld [vmem:[%s2 + $0x10] sm:$0xff]
        %v295 = vld [vmem:[%s2 + $0x18] sm:$0xff]
        %v296 = vlaneseq
        %v297 = vshrl.u32 %v296, 7
        %v298 = vsub.s32 0, %v297
        %v299 = vrot.slane %v275, %v298
        %v301 = vsel %vm277, %v291, 0
        %303 = vmatprep.subr.mxu0 0.0
        %304 = vmatpush1.msra.mxu0 %v292
        %305 = vmatprep.subr.mxu0 0.0
        %306 = vmatpush1.msra.mxu0 %v293
        %307 = vmatprep.subr.mxu0 0.0
        %308 = vmatpush1.msra.mxu0 %v294
        %309 = vmatprep.subr.mxu0 0.0
        %310 = vmatpush1.msra.mxu0 %v295
        %311 = vmatprep.subr.mxu0 0.0
        %312 = vmatpush1.msra.mxu0 0.0
        %313 = vmatprep.subr.mxu0 0.0
        %314 = vmatpush1.msra.mxu0 0.0
        %315 = vmatprep.subr.mxu0 0.0
        %316 = vmatpush1.msra.mxu0 0.0
        %317 = vmatprep.subr.mxu0 0.0
        %318 = vmatpush1.msra.mxu0 0.0
        %319 = vmatprep.subr.mxu0 0.0
        %320 = vmatpush1.msra.mxu0 0.0
        %321 = vmatprep.subr.mxu0 0.0
        %322 = vmatpush1.msra.mxu0 0.0
        %323 = vmatprep.subr.mxu0 0.0
        %324 = vmatpush1.msra.mxu0 0.0
        %325 = vmatprep.subr.mxu0 0.0
        %326 = vmatpush1.msra.mxu0 0.0
        %327 = vmatprep.subr.mxu0 0.0
        %328 = vmatpush1.msra.mxu0 0.0
        %329 = vmatprep.subr.mxu0 0.0
        %330 = vmatpush1.msra.mxu0 0.0
        %331 = vmatprep.subr.mxu0 0.0
        %332 = vmatpush1.msra.mxu0 0.0
        %333 = vmatprep.subr.mxu0 0.0
        %334 = vmatpush1.msra.mxu0 0.0
        %335 = vmatprep.subr.mxu0 0.0
        %336 = vmatpush1.msra.mxu0 0.0
        %337 = vmatprep.subr.mxu0 0.0
        %338 = vmatpush1.msra.mxu0 0.0
        %339 = vmatprep.subr.mxu0 0.0
        %340 = vmatpush1.msra.mxu0 0.0
        %341 = vmatprep.subr.mxu0 0.0
        %342 = vmatpush1.msra.mxu0 0.0
        %343 = vmatprep.subr.mxu0 0.0
        %344 = vmatpush1.msra.mxu0 0.0
        %345 = vmatprep.subr.mxu0 0.0
        %346 = vmatpush1.msra.mxu0 0.0
        %347 = vmatprep.subr.mxu0 0.0
        %348 = vmatpush1.msra.mxu0 0.0
        %349 = vmatprep.subr.mxu0 0.0
        %350 = vmatpush1.msra.mxu0 0.0
        %351 = vmatprep.subr.mxu0 0.0
        %352 = vmatpush1.msra.mxu0 0.0
        %353 = vmatprep.subr.mxu0 0.0
        %354 = vmatpush1.msra.mxu0 0.0
        %355 = vmatprep.subr.mxu0 0.0
        %356 = vmatpush1.msra.mxu0 0.0
        %357 = vmatprep.subr.mxu0 0.0
        %358 = vmatpush1.msra.mxu0 0.0
        %359 = vmatprep.subr.mxu0 0.0
        %360 = vmatpush1.msra.mxu0 0.0
        %361 = vmatprep.subr.mxu0 0.0
        %362 = vmatpush1.msra.mxu0 0.0
        %363 = vmatprep.subr.mxu0 0.0
        %364 = vmatpush1.msra.mxu0 0.0
        %365 = vmatprep.subr.mxu0 0.0
        %366 = vmatpush1.msra.mxu0 0.0
        %367 = vmatprep.mubr.f32.mxu0 0.0
        %368 = vmatmul.mubr.f32.gmra.mrb[0].mxu0 %v301
        %v369 = vpop.f32.mrb[0].mxu0
        %v370 = vadd.f32 %v299, %v369
        %v371 = vpop.f32.mrb[0].mxu0
        %372 = vdwg.mxu0
        %374 = vrot.lane.b32.xlu0 %v370, 96
        %v375 = vpop.permute.xlu0 %374
        %vm376 = vcmask 64512
        %v377 = vsel %vm376, %v370, 0
        %v379 = vsel %vm376, %v375, 0
        %381 = vmatprep.subr.mxu0 0.0
        %382 = vmatpush1.xpose.msra.mxu0 %v379
        %383 = vmatprep.subr.mxu0 0.0
        %384 = vmatpush1.xpose.msra.mxu0 0.0
        %385 = vmatprep.subr.mxu0 0.0
        %386 = vmatpush1.xpose.msra.mxu0 0.0
        %387 = vmatprep.subr.mxu0 0.0
        %388 = vmatpush1.xpose.msra.mxu0 0.0
        %389 = vmatprep.subr.mxu0 0.0
        %390 = vmatpush1.xpose.msra.mxu0 0.0
        %391 = vmatprep.subr.mxu0 0.0
        %392 = vmatpush1.xpose.msra.mxu0 0.0
        %393 = vmatprep.subr.mxu0 0.0
        %394 = vmatpush1.xpose.msra.mxu0 0.0
        %395 = vmatprep.subr.mxu0 0.0
        %396 = vmatpush1.xpose.msra.mxu0 0.0
        %397 = vmatprep.subr.mxu0 0.0
        %398 = vmatpush1.xpose.msra.mxu0 0.0
        %399 = vmatprep.subr.mxu0 0.0
        %400 = vmatpush1.xpose.msra.mxu0 0.0
        %401 = vmatprep.subr.mxu0 0.0
        %402 = vmatpush1.xpose.msra.mxu0 0.0
        %403 = vmatprep.subr.mxu0 0.0
        %404 = vmatpush1.xpose.msra.mxu0 0.0
        %405 = vmatprep.subr.mxu0 0.0
        %406 = vmatpush1.xpose.msra.mxu0 0.0
        %407 = vmatprep.subr.mxu0 0.0
        %408 = vmatpush1.xpose.msra.mxu0 0.0
        %409 = vmatprep.subr.mxu0 0.0
        %410 = vmatpush1.xpose.msra.mxu0 0.0
        %411 = vmatprep.subr.mxu0 0.0
        %412 = vmatpush1.xpose.msra.mxu0 0.0
        %413 = vmatprep.subr.mxu0 0.0
        %414 = vmatpush1.xpose.msra.mxu0 0.0
        %415 = vmatprep.subr.mxu0 0.0
        %416 = vmatpush1.xpose.msra.mxu0 0.0
        %417 = vmatprep.subr.mxu0 0.0
        %418 = vmatpush1.xpose.msra.mxu0 0.0
        %419 = vmatprep.subr.mxu0 0.0
        %420 = vmatpush1.xpose.msra.mxu0 0.0
        %421 = vmatprep.subr.mxu0 0.0
        %422 = vmatpush1.xpose.msra.mxu0 0.0
        %423 = vmatprep.subr.mxu0 0.0
        %424 = vmatpush1.xpose.msra.mxu0 0.0
        %425 = vmatprep.subr.mxu0 0.0
        %426 = vmatpush1.xpose.msra.mxu0 0.0
        %427 = vmatprep.subr.mxu0 0.0
        %428 = vmatpush1.xpose.msra.mxu0 0.0
        %429 = vmatprep.subr.mxu0 0.0
        %430 = vmatpush1.xpose.msra.mxu0 0.0
        %431 = vmatprep.subr.mxu0 0.0
        %432 = vmatpush1.xpose.msra.mxu0 0.0
        %433 = vmatprep.subr.mxu0 0.0
        %434 = vmatpush1.xpose.msra.mxu0 0.0
        %435 = vmatprep.subr.mxu0 0.0
        %436 = vmatpush1.xpose.msra.mxu0 0.0
        %437 = vmatprep.subr.mxu0 0.0
        %438 = vmatpush1.xpose.msra.mxu0 0.0
        %439 = vmatprep.subr.mxu0 0.0
        %440 = vmatpush1.xpose.msra.mxu0 0.0
        %441 = vmatprep.subr.mxu0 0.0
        %442 = vmatpush1.xpose.msra.mxu0 0.0
        %443 = vmatprep.subr.mxu0 0.0
        %444 = vmatpush1.xpose.msra.mxu0 0.0
        %445 = vmatprep.mubr.f32.mxu0 0.0
        %446 = vmatmul.mubr.f32.gmra.mrb[0].mxu0 %v377
        %v447 = vpop.f32.mrb[0].mxu0
        %v448 = vadd.f32 %v276, %v447
        %v449 = vpop.f32.mrb[0].mxu0
        %450 = vdwg.mxu0
        %v451 = vsel %vm376, %v448, -inf
        %452 = vmax.xlane.f32.xlu0 %v451
        %v453 = vpop.xlane.xlu0 %452
        %v454 = vsub.f32 %v448, %v453
        %v455 = vmul.f32 %v454, 1.442695
        %v456 = vpow.pop %v455
        %v457 = vsel %vm376, %v456, 0.0
        %458 = vadd.xlane.f32.xlu0 %v457
        %v459 = vpop.xlane.xlu0 %458
        %v460 = vrcp.pop %v459
        %v461 = vmul.f32 %v456, %v460
        %462 = vrot.lane.b32.xlu0 %v370, 64
        %v463 = vpop.permute.xlu0 %462
        %v466 = vsel %vm376, %v461, 0
        %468 = vmatprep.subr.mxu0 0.0
        %469 = vmatpush1.msra.mxu0 %v463
        %470 = vmatprep.subr.mxu0 0.0
        %471 = vmatpush1.msra.mxu0 0.0
        %472 = vmatprep.subr.mxu0 0.0
        %473 = vmatpush1.msra.mxu0 0.0
        %474 = vmatprep.subr.mxu0 0.0
        %475 = vmatpush1.msra.mxu0 0.0
        %476 = vmatprep.subr.mxu0 0.0
        %477 = vmatpush1.msra.mxu0 0.0
        %478 = vmatprep.subr.mxu0 0.0
        %479 = vmatpush1.msra.mxu0 0.0
        %480 = vmatprep.subr.mxu0 0.0
        %481 = vmatpush1.msra.mxu0 0.0
        %482 = vmatprep.subr.mxu0 0.0
        %483 = vmatpush1.msra.mxu0 0.0
        %484 = vmatprep.subr.mxu0 0.0
        %485 = vmatpush1.msra.mxu0 0.0
        %486 = vmatprep.subr.mxu0 0.0
        %487 = vmatpush1.msra.mxu0 0.0
        %488 = vmatprep.subr.mxu0 0.0
        %489 = vmatpush1.msra.mxu0 0.0
        %490 = vmatprep.subr.mxu0 0.0
        %491 = vmatpush1.msra.mxu0 0.0
        %492 = vmatprep.subr.mxu0 0.0
        %493 = vmatpush1.msra.mxu0 0.0
        %494 = vmatprep.subr.mxu0 0.0
        %495 = vmatpush1.msra.mxu0 0.0
        %496 = vmatprep.subr.mxu0 0.0
        %497 = vmatpush1.msra.mxu0 0.0
        %498 = vmatprep.subr.mxu0 0.0
        %499 = vmatpush1.msra.mxu0 0.0
        %500 = vmatprep.subr.mxu0 0.0
        %501 = vmatpush1.msra.mxu0 0.0
        %502 = vmatprep.subr.mxu0 0.0
        %503 = vmatpush1.msra.mxu0 0.0
        %504 = vmatprep.subr.mxu0 0.0
        %505 = vmatpush1.msra.mxu0 0.0
        %506 = vmatprep.subr.mxu0 0.0
        %507 = vmatpush1.msra.mxu0 0.0
        %508 = vmatprep.subr.mxu0 0.0
        %509 = vmatpush1.msra.mxu0 0.0
        %510 = vmatprep.subr.mxu0 0.0
        %511 = vmatpush1.msra.mxu0 0.0
        %512 = vmatprep.subr.mxu0 0.0
        %513 = vmatpush1.msra.mxu0 0.0
        %514 = vmatprep.subr.mxu0 0.0
        %515 = vmatpush1.msra.mxu0 0.0
        %516 = vmatprep.subr.mxu0 0.0
        %517 = vmatpush1.msra.mxu0 0.0
        %518 = vmatprep.subr.mxu0 0.0
        %519 = vmatpush1.msra.mxu0 0.0
        %520 = vmatprep.subr.mxu0 0.0
        %521 = vmatpush1.msra.mxu0 0.0
        %522 = vmatprep.subr.mxu0 0.0
        %523 = vmatpush1.msra.mxu0 0.0
        %524 = vmatprep.subr.mxu0 0.0
        %525 = vmatpush1.msra.mxu0 0.0
        %526 = vmatprep.subr.mxu0 0.0
        %527 = vmatpush1.msra.mxu0 0.0
        %528 = vmatprep.subr.mxu0 0.0
        %529 = vmatpush1.msra.mxu0 0.0
        %530 = vmatprep.subr.mxu0 0.0
        %531 = vmatpush1.msra.mxu0 0.0
        %532 = vmatprep.mubr.f32.mxu0 0.0
        %533 = vmatmul.mubr.f32.gmra.mrb[0].mxu0 %v466
        %v534 = vpop.f32.mrb[0].mxu0
        %v535 = vadd.f32 0.0, %v534
        %v536 = vpop.f32.mrb[0].mxu0
        %537 = vdwg.mxu0
        %538 = vrot.lane.b32.xlu0 %v370, 120
        %v539 = vpop.permute.xlu0 %538
        %540 = vrot.lane.b32.xlu0 %v370, 88
        %v541 = vpop.permute.xlu0 %540
        %v542 = vsel %vm376, %v539, 0
        %v544 = vsel %vm376, %v541, 0
        %546 = vmatprep.subr.mxu0 0.0
        %547 = vmatpush1.xpose.msra.mxu0 %v544
        %548 = vmatprep.subr.mxu0 0.0
        %549 = vmatpush1.xpose.msra.mxu0 0.0
        %550 = vmatprep.subr.mxu0 0.0
        %551 = vmatpush1.xpose.msra.mxu0 0.0
        %552 = vmatprep.subr.mxu0 0.0
        %553 = vmatpush1.xpose.msra.mxu0 0.0
        %554 = vmatprep.subr.mxu0 0.0
        %555 = vmatpush1.xpose.msra.mxu0 0.0
        %556 = vmatprep.subr.mxu0 0.0
        %557 = vmatpush1.xpose.msra.mxu0 0.0
        %558 = vmatprep.subr.mxu0 0.0
        %559 = vmatpush1.xpose.msra.mxu0 0.0
        %560 = vmatprep.subr.mxu0 0.0
        %561 = vmatpush1.xpose.msra.mxu0 0.0
        %562 = vmatprep.subr.mxu0 0.0
        %563 = vmatpush1.xpose.msra.mxu0 0.0
        %564 = vmatprep.subr.mxu0 0.0
        %565 = vmatpush1.xpose.msra.mxu0 0.0
        %566 = vmatprep.subr.mxu0 0.0
        %567 = vmatpush1.xpose.msra.mxu0 0.0
        %568 = vmatprep.subr.mxu0 0.0
        %569 = vmatpush1.xpose.msra.mxu0 0.0
        %570 = vmatprep.subr.mxu0 0.0
        %571 = vmatpush1.xpose.msra.mxu0 0.0
        %572 = vmatprep.subr.mxu0 0.0
        %573 = vmatpush1.xpose.msra.mxu0 0.0
        %574 = vmatprep.subr.mxu0 0.0
        %575 = vmatpush1.xpose.msra.mxu0 0.0
        %576 = vmatprep.subr.mxu0 0.0
        %577 = vmatpush1.xpose.msra.mxu0 0.0
        %578 = vmatprep.subr.mxu0 0.0
        %579 = vmatpush1.xpose.msra.mxu0 0.0
        %580 = vmatprep.subr.mxu0 0.0
        %581 = vmatpush1.xpose.msra.mxu0 0.0
        %582 = vmatprep.subr.mxu0 0.0
        %583 = vmatpush1.xpose.msra.mxu0 0.0
        %584 = vmatprep.subr.mxu0 0.0
        %585 = vmatpush1.xpose.msra.mxu0 0.0
        %586 = vmatprep.subr.mxu0 0.0
        %587 = vmatpush1.xpose.msra.mxu0 0.0
        %588 = vmatprep.subr.mxu0 0.0
        %589 = vmatpush1.xpose.msra.mxu0 0.0
        %590 = vmatprep.subr.mxu0 0.0
        %591 = vmatpush1.xpose.msra.mxu0 0.0
        %592 = vmatprep.subr.mxu0 0.0
        %593 = vmatpush1.xpose.msra.mxu0 0.0
        %594 = vmatprep.subr.mxu0 0.0
        %595 = vmatpush1.xpose.msra.mxu0 0.0
        %596 = vmatprep.subr.mxu0 0.0
        %597 = vmatpush1.xpose.msra.mxu0 0.0
        %598 = vmatprep.subr.mxu0 0.0
        %599 = vmatpush1.xpose.msra.mxu0 0.0
        %600 = vmatprep.subr.mxu0 0.0
        %601 = vmatpush1.xpose.msra.mxu0 0.0
        %602 = vmatprep.subr.mxu0 0.0
        %603 = vmatpush1.xpose.msra.mxu0 0.0
        %604 = vmatprep.subr.mxu0 0.0
        %605 = vmatpush1.xpose.msra.mxu0 0.0
        %606 = vmatprep.subr.mxu0 0.0
        %607 = vmatpush1.xpose.msra.mxu0 0.0
        %608 = vmatprep.subr.mxu0 0.0
        %609 = vmatpush1.xpose.msra.mxu0 0.0
        %610 = vmatprep.mubr.f32.mxu0 0.0
        %611 = vmatmul.mubr.f32.gmra.mrb[0].mxu0 %v542
        %v612 = vpop.f32.mrb[0].mxu0
        %v613 = vadd.f32 %v276, %v612
        %v614 = vpop.f32.mrb[0].mxu0
        %615 = vdwg.mxu0
        %v616 = vsel %vm376, %v613, -inf
        %617 = vmax.xlane.f32.xlu0 %v616
        %v618 = vpop.xlane.xlu0 %617
        %v619 = vsub.f32 %v613, %v618
        %v620 = vmul.f32 %v619, 1.442695
        %v621 = vpow.pop %v620
        %v622 = vsel %vm376, %v621, 0.0
        %623 = vadd.xlane.f32.xlu0 %v622
        %v624 = vpop.xlane.xlu0 %623
        %v625 = vrcp.pop %v624
        %v626 = vmul.f32 %v621, %v625
        %627 = vrot.lane.b32.xlu0 %v370, 56
        %v628 = vpop.permute.xlu0 %627
        %v631 = vsel %vm376, %v626, 0
        %633 = vmatprep.subr.mxu0 0.0
        %634 = vmatpush1.msra.mxu0 %v628
        %635 = vmatprep.subr.mxu0 0.0
        %636 = vmatpush1.msra.mxu0 0.0
        %637 = vmatprep.subr.mxu0 0.0
        %638 = vmatpush1.msra.mxu0 0.0
        %639 = vmatprep.subr.mxu0 0.0
        %640 = vmatpush1.msra.mxu0 0.0
        %641 = vmatprep.subr.mxu0 0.0
        %642 = vmatpush1.msra.mxu0 0.0
        %643 = vmatprep.subr.mxu0 0.0
        %644 = vmatpush1.msra.mxu0 0.0
        %645 = vmatprep.subr.mxu0 0.0
        %646 = vmatpush1.msra.mxu0 0.0
        %647 = vmatprep.subr.mxu0 0.0
        %648 = vmatpush1.msra.mxu0 0.0
        %649 = vmatprep.subr.mxu0 0.0
        %650 = vmatpush1.msra.mxu0 0.0
        %651 = vmatprep.subr.mxu0 0.0
        %652 = vmatpush1.msra.mxu0 0.0
        %653 = vmatprep.subr.mxu0 0.0
        %654 = vmatpush1.msra.mxu0 0.0
        %655 = vmatprep.subr.mxu0 0.0
        %656 = vmatpush1.msra.mxu0 0.0
        %657 = vmatprep.subr.mxu0 0.0
        %658 = vmatpush1.msra.mxu0 0.0
        %659 = vmatprep.subr.mxu0 0.0
        %660 = vmatpush1.msra.mxu0 0.0
        %661 = vmatprep.subr.mxu0 0.0
        %662 = vmatpush1.msra.mxu0 0.0
        %663 = vmatprep.subr.mxu0 0.0
        %664 = vmatpush1.msra.mxu0 0.0
        %665 = vmatprep.subr.mxu0 0.0
        %666 = vmatpush1.msra.mxu0 0.0
        %667 = vmatprep.subr.mxu0 0.0
        %668 = vmatpush1.msra.mxu0 0.0
        %669 = vmatprep.subr.mxu0 0.0
        %670 = vmatpush1.msra.mxu0 0.0
        %671 = vmatprep.subr.mxu0 0.0
        %672 = vmatpush1.msra.mxu0 0.0
        %673 = vmatprep.subr.mxu0 0.0
        %674 = vmatpush1.msra.mxu0 0.0
        %675 = vmatprep.subr.mxu0 0.0
        %676 = vmatpush1.msra.mxu0 0.0
        %677 = vmatprep.subr.mxu0 0.0
        %678 = vmatpush1.msra.mxu0 0.0
        %679 = vmatprep.subr.mxu0 0.0
        %680 = vmatpush1.msra.mxu0 0.0
        %681 = vmatprep.subr.mxu0 0.0
        %682 = vmatpush1.msra.mxu0 0.0
        %683 = vmatprep.subr.mxu0 0.0
        %684 = vmatpush1.msra.mxu0 0.0
        %685 = vmatprep.subr.mxu0 0.0
        %686 = vmatpush1.msra.mxu0 0.0
        %687 = vmatprep.subr.mxu0 0.0
        %688 = vmatpush1.msra.mxu0 0.0
        %689 = vmatprep.subr.mxu0 0.0
        %690 = vmatpush1.msra.mxu0 0.0
        %691 = vmatprep.subr.mxu0 0.0
        %692 = vmatpush1.msra.mxu0 0.0
        %693 = vmatprep.subr.mxu0 0.0
        %694 = vmatpush1.msra.mxu0 0.0
        %695 = vmatprep.subr.mxu0 0.0
        %696 = vmatpush1.msra.mxu0 0.0
        %697 = vmatprep.mubr.f32.mxu0 0.0
        %698 = vmatmul.mubr.f32.gmra.mrb[0].mxu0 %v631
        %v699 = vpop.f32.mrb[0].mxu0
        %v700 = vadd.f32 0.0, %v699
        %v701 = vpop.f32.mrb[0].mxu0
        %702 = vdwg.mxu0
        %703 = vrot.lane.b32.xlu0 %v370, 112
        %v704 = vpop.permute.xlu0 %703
        %705 = vrot.lane.b32.xlu0 %v370, 80
        %v706 = vpop.permute.xlu0 %705
        %v707 = vsel %vm376, %v704, 0
        %v709 = vsel %vm376, %v706, 0
        %711 = vmatprep.subr.mxu0 0.0
        %712 = vmatpush1.xpose.msra.mxu0 %v709
        %713 = vmatprep.subr.mxu0 0.0
        %714 = vmatpush1.xpose.msra.mxu0 0.0
        %715 = vmatprep.subr.mxu0 0.0
        %716 = vmatpush1.xpose.msra.mxu0 0.0
        %717 = vmatprep.subr.mxu0 0.0
        %718 = vmatpush1.xpose.msra.mxu0 0.0
        %719 = vmatprep.subr.mxu0 0.0
        %720 = vmatpush1.xpose.msra.mxu0 0.0
        %721 = vmatprep.subr.mxu0 0.0
        %722 = vmatpush1.xpose.msra.mxu0 0.0
        %723 = vmatprep.subr.mxu0 0.0
        %724 = vmatpush1.xpose.msra.mxu0 0.0
        %725 = vmatprep.subr.mxu0 0.0
        %726 = vmatpush1.xpose.msra.mxu0 0.0
        %727 = vmatprep.subr.mxu0 0.0
        %728 = vmatpush1.xpose.msra.mxu0 0.0
        %729 = vmatprep.subr.mxu0 0.0
        %730 = vmatpush1.xpose.msra.mxu0 0.0
        %731 = vmatprep.subr.mxu0 0.0
        %732 = vmatpush1.xpose.msra.mxu0 0.0
        %733 = vmatprep.subr.mxu0 0.0
        %734 = vmatpush1.xpose.msra.mxu0 0.0
        %735 = vmatprep.subr.mxu0 0.0
        %736 = vmatpush1.xpose.msra.mxu0 0.0
        %737 = vmatprep.subr.mxu0 0.0
        %738 = vmatpush1.xpose.msra.mxu0 0.0
        %739 = vmatprep.subr.mxu0 0.0
        %740 = vmatpush1.xpose.msra.mxu0 0.0
        %741 = vmatprep.subr.mxu0 0.0
        %742 = vmatpush1.xpose.msra.mxu0 0.0
        %743 = vmatprep.subr.mxu0 0.0
        %744 = vmatpush1.xpose.msra.mxu0 0.0
        %745 = vmatprep.subr.mxu0 0.0
        %746 = vmatpush1.xpose.msra.mxu0 0.0
        %747 = vmatprep.subr.mxu0 0.0
        %748 = vmatpush1.xpose.msra.mxu0 0.0
        %749 = vmatprep.subr.mxu0 0.0
        %750 = vmatpush1.xpose.msra.mxu0 0.0
        %751 = vmatprep.subr.mxu0 0.0
        %752 = vmatpush1.xpose.msra.mxu0 0.0
        %753 = vmatprep.subr.mxu0 0.0
        %754 = vmatpush1.xpose.msra.mxu0 0.0
        %755 = vmatprep.subr.mxu0 0.0
        %756 = vmatpush1.xpose.msra.mxu0 0.0
        %757 = vmatprep.subr.mxu0 0.0
        %758 = vmatpush1.xpose.msra.mxu0 0.0
        %759 = vmatprep.subr.mxu0 0.0
        %760 = vmatpush1.xpose.msra.mxu0 0.0
        %761 = vmatprep.subr.mxu0 0.0
        %762 = vmatpush1.xpose.msra.mxu0 0.0
        %763 = vmatprep.subr.mxu0 0.0
        %764 = vmatpush1.xpose.msra.mxu0 0.0
        %765 = vmatprep.subr.mxu0 0.0
        %766 = vmatpush1.xpose.msra.mxu0 0.0
        %767 = vmatprep.subr.mxu0 0.0
        %768 = vmatpush1.xpose.msra.mxu0 0.0
        %769 = vmatprep.subr.mxu0 0.0
        %770 = vmatpush1.xpose.msra.mxu0 0.0
        %771 = vmatprep.subr.mxu0 0.0
        %772 = vmatpush1.xpose.msra.mxu0 0.0
        %773 = vmatprep.subr.mxu0 0.0
        %774 = vmatpush1.xpose.msra.mxu0 0.0
        %775 = vmatprep.mubr.f32.mxu0 0.0
        %776 = vmatmul.mubr.f32.gmra.mrb[0].mxu0 %v707
        %v777 = vpop.f32.mrb[0].mxu0
        %v778 = vadd.f32 %v276, %v777
        %v779 = vpop.f32.mrb[0].mxu0
        %780 = vdwg.mxu0
        %v781 = vsel %vm376, %v778, -inf
        %782 = vmax.xlane.f32.xlu0 %v781
        %v783 = vpop.xlane.xlu0 %782
        %v784 = vsub.f32 %v778, %v783
        %v785 = vmul.f32 %v784, 1.442695
        %v786 = vpow.pop %v785
        %v787 = vsel %vm376, %v786, 0.0
        %788 = vadd.xlane.f32.xlu0 %v787
        %v789 = vpop.xlane.xlu0 %788
        %v790 = vrcp.pop %v789
        %v791 = vmul.f32 %v786, %v790
        %792 = vrot.lane.b32.xlu0 %v370, 48
        %v793 = vpop.permute.xlu0 %792
        %v796 = vsel %vm376, %v791, 0
        %798 = vmatprep.subr.mxu0 0.0
        %799 = vmatpush1.msra.mxu0 %v793
        %800 = vmatprep.subr.mxu0 0.0
        %801 = vmatpush1.msra.mxu0 0.0
        %802 = vmatprep.subr.mxu0 0.0
        %803 = vmatpush1.msra.mxu0 0.0
        %804 = vmatprep.subr.mxu0 0.0
        %805 = vmatpush1.msra.mxu0 0.0
        %806 = vmatprep.subr.mxu0 0.0
        %807 = vmatpush1.msra.mxu0 0.0
        %808 = vmatprep.subr.mxu0 0.0
        %809 = vmatpush1.msra.mxu0 0.0
        %810 = vmatprep.subr.mxu0 0.0
        %811 = vmatpush1.msra.mxu0 0.0
        %812 = vmatprep.subr.mxu0 0.0
        %813 = vmatpush1.msra.mxu0 0.0
        %814 = vmatprep.subr.mxu0 0.0
        %815 = vmatpush1.msra.mxu0 0.0
        %816 = vmatprep.subr.mxu0 0.0
        %817 = vmatpush1.msra.mxu0 0.0
        %818 = vmatprep.subr.mxu0 0.0
        %819 = vmatpush1.msra.mxu0 0.0
        %820 = vmatprep.subr.mxu0 0.0
        %821 = vmatpush1.msra.mxu0 0.0
        %822 = vmatprep.subr.mxu0 0.0
        %823 = vmatpush1.msra.mxu0 0.0
        %824 = vmatprep.subr.mxu0 0.0
        %825 = vmatpush1.msra.mxu0 0.0
        %826 = vmatprep.subr.mxu0 0.0
        %827 = vmatpush1.msra.mxu0 0.0
        %828 = vmatprep.subr.mxu0 0.0
        %829 = vmatpush1.msra.mxu0 0.0
        %830 = vmatprep.subr.mxu0 0.0
        %831 = vmatpush1.msra.mxu0 0.0
        %832 = vmatprep.subr.mxu0 0.0
        %833 = vmatpush1.msra.mxu0 0.0
        %834 = vmatprep.subr.mxu0 0.0
        %835 = vmatpush1.msra.mxu0 0.0
        %836 = vmatprep.subr.mxu0 0.0
        %837 = vmatpush1.msra.mxu0 0.0
        %838 = vmatprep.subr.mxu0 0.0
        %839 = vmatpush1.msra.mxu0 0.0
        %840 = vmatprep.subr.mxu0 0.0
        %841 = vmatpush1.msra.mxu0 0.0
        %842 = vmatprep.subr.mxu0 0.0
        %843 = vmatpush1.msra.mxu0 0.0
        %844 = vmatprep.subr.mxu0 0.0
        %845 = vmatpush1.msra.mxu0 0.0
        %846 = vmatprep.subr.mxu0 0.0
        %847 = vmatpush1.msra.mxu0 0.0
        %848 = vmatprep.subr.mxu0 0.0
        %849 = vmatpush1.msra.mxu0 0.0
        %850 = vmatprep.subr.mxu0 0.0
        %851 = vmatpush1.msra.mxu0 0.0
        %852 = vmatprep.subr.mxu0 0.0
        %853 = vmatpush1.msra.mxu0 0.0
        %854 = vmatprep.subr.mxu0 0.0
        %855 = vmatpush1.msra.mxu0 0.0
        %856 = vmatprep.subr.mxu0 0.0
        %857 = vmatpush1.msra.mxu0 0.0
        %858 = vmatprep.subr.mxu0 0.0
        %859 = vmatpush1.msra.mxu0 0.0
        %860 = vmatprep.subr.mxu0 0.0
        %861 = vmatpush1.msra.mxu0 0.0
        %862 = vmatprep.mubr.f32.mxu0 0.0
        %863 = vmatmul.mubr.f32.gmra.mrb[0].mxu0 %v796
        %v864 = vpop.f32.mrb[0].mxu0
        %v865 = vadd.f32 0.0, %v864
        %v866 = vpop.f32.mrb[0].mxu0
        %867 = vdwg.mxu0
        %868 = vrot.lane.b32.xlu0 %v370, 104
        %v869 = vpop.permute.xlu0 %868
        %870 = vrot.lane.b32.xlu0 %v370, 72
        %v871 = vpop.permute.xlu0 %870
        %v872 = vsel %vm376, %v869, 0
        %v874 = vsel %vm376, %v871, 0
        %876 = vmatprep.subr.mxu0 0.0
        %877 = vmatpush1.xpose.msra.mxu0 %v874
        %878 = vmatprep.subr.mxu0 0.0
        %879 = vmatpush1.xpose.msra.mxu0 0.0
        %880 = vmatprep.subr.mxu0 0.0
        %881 = vmatpush1.xpose.msra.mxu0 0.0
        %882 = vmatprep.subr.mxu0 0.0
        %883 = vmatpush1.xpose.msra.mxu0 0.0
        %884 = vmatprep.subr.mxu0 0.0
        %885 = vmatpush1.xpose.msra.mxu0 0.0
        %886 = vmatprep.subr.mxu0 0.0
        %887 = vmatpush1.xpose.msra.mxu0 0.0
        %888 = vmatprep.subr.mxu0 0.0
        %889 = vmatpush1.xpose.msra.mxu0 0.0
        %890 = vmatprep.subr.mxu0 0.0
        %891 = vmatpush1.xpose.msra.mxu0 0.0
        %892 = vmatprep.subr.mxu0 0.0
        %893 = vmatpush1.xpose.msra.mxu0 0.0
        %894 = vmatprep.subr.mxu0 0.0
        %895 = vmatpush1.xpose.msra.mxu0 0.0
        %896 = vmatprep.subr.mxu0 0.0
        %897 = vmatpush1.xpose.msra.mxu0 0.0
        %898 = vmatprep.subr.mxu0 0.0
        %899 = vmatpush1.xpose.msra.mxu0 0.0
        %900 = vmatprep.subr.mxu0 0.0
        %901 = vmatpush1.xpose.msra.mxu0 0.0
        %902 = vmatprep.subr.mxu0 0.0
        %903 = vmatpush1.xpose.msra.mxu0 0.0
        %904 = vmatprep.subr.mxu0 0.0
        %905 = vmatpush1.xpose.msra.mxu0 0.0
        %906 = vmatprep.subr.mxu0 0.0
        %907 = vmatpush1.xpose.msra.mxu0 0.0
        %908 = vmatprep.subr.mxu0 0.0
        %909 = vmatpush1.xpose.msra.mxu0 0.0
        %910 = vmatprep.subr.mxu0 0.0
        %911 = vmatpush1.xpose.msra.mxu0 0.0
        %912 = vmatprep.subr.mxu0 0.0
        %913 = vmatpush1.xpose.msra.mxu0 0.0
        %914 = vmatprep.subr.mxu0 0.0
        %915 = vmatpush1.xpose.msra.mxu0 0.0
        %916 = vmatprep.subr.mxu0 0.0
        %917 = vmatpush1.xpose.msra.mxu0 0.0
        %918 = vmatprep.subr.mxu0 0.0
        %919 = vmatpush1.xpose.msra.mxu0 0.0
        %920 = vmatprep.subr.mxu0 0.0
        %921 = vmatpush1.xpose.msra.mxu0 0.0
        %922 = vmatprep.subr.mxu0 0.0
        %923 = vmatpush1.xpose.msra.mxu0 0.0
        %924 = vmatprep.subr.mxu0 0.0
        %925 = vmatpush1.xpose.msra.mxu0 0.0
        %926 = vmatprep.subr.mxu0 0.0
        %927 = vmatpush1.xpose.msra.mxu0 0.0
        %928 = vmatprep.subr.mxu0 0.0
        %929 = vmatpush1.xpose.msra.mxu0 0.0
        %930 = vmatprep.subr.mxu0 0.0
        %931 = vmatpush1.xpose.msra.mxu0 0.0
        %932 = vmatprep.subr.mxu0 0.0
        %933 = vmatpush1.xpose.msra.mxu0 0.0
        %934 = vmatprep.subr.mxu0 0.0
        %935 = vmatpush1.xpose.msra.mxu0 0.0
        %936 = vmatprep.subr.mxu0 0.0
        %937 = vmatpush1.xpose.msra.mxu0 0.0
        %938 = vmatprep.subr.mxu0 0.0
        %939 = vmatpush1.xpose.msra.mxu0 0.0
        %940 = vmatprep.mubr.f32.mxu0 0.0
        %941 = vmatmul.mubr.f32.gmra.mrb[0].mxu0 %v872
        %v942 = vpop.f32.mrb[0].mxu0
        %v943 = vadd.f32 %v276, %v942
        %v944 = vpop.f32.mrb[0].mxu0
        %945 = vdwg.mxu0
        %v946 = vsel %vm376, %v943, -inf
        %947 = vmax.xlane.f32.xlu0 %v946
        %v948 = vpop.xlane.xlu0 %947
        %v949 = vsub.f32 %v943, %v948
        %v950 = vmul.f32 %v949, 1.442695
        %v951 = vpow.pop %v950
        %v952 = vsel %vm376, %v951, 0.0
        %953 = vadd.xlane.f32.xlu0 %v952
        %v954 = vpop.xlane.xlu0 %953
        %v955 = vrcp.pop %v954
        %v956 = vmul.f32 %v951, %v955
        %957 = vrot.lane.b32.xlu0 %v370, 40
        %v958 = vpop.permute.xlu0 %957
        %v961 = vsel %vm376, %v956, 0
        %963 = vmatprep.subr.mxu0 0.0
        %964 = vmatpush1.msra.mxu0 %v958
        %965 = vmatprep.subr.mxu0 0.0
        %966 = vmatpush1.msra.mxu0 0.0
        %967 = vmatprep.subr.mxu0 0.0
        %968 = vmatpush1.msra.mxu0 0.0
        %969 = vmatprep.subr.mxu0 0.0
        %970 = vmatpush1.msra.mxu0 0.0
        %971 = vmatprep.subr.mxu0 0.0
        %972 = vmatpush1.msra.mxu0 0.0
        %973 = vmatprep.subr.mxu0 0.0
        %974 = vmatpush1.msra.mxu0 0.0
        %975 = vmatprep.subr.mxu0 0.0
        %976 = vmatpush1.msra.mxu0 0.0
        %977 = vmatprep.subr.mxu0 0.0
        %978 = vmatpush1.msra.mxu0 0.0
        %979 = vmatprep.subr.mxu0 0.0
        %980 = vmatpush1.msra.mxu0 0.0
        %981 = vmatprep.subr.mxu0 0.0
        %982 = vmatpush1.msra.mxu0 0.0
        %983 = vmatprep.subr.mxu0 0.0
        %984 = vmatpush1.msra.mxu0 0.0
        %985 = vmatprep.subr.mxu0 0.0
        %986 = vmatpush1.msra.mxu0 0.0
        %987 = vmatprep.subr.mxu0 0.0
        %988 = vmatpush1.msra.mxu0 0.0
        %989 = vmatprep.subr.mxu0 0.0
        %990 = vmatpush1.msra.mxu0 0.0
        %991 = vmatprep.subr.mxu0 0.0
        %992 = vmatpush1.msra.mxu0 0.0
        %993 = vmatprep.subr.mxu0 0.0
        %994 = vmatpush1.msra.mxu0 0.0
        %995 = vmatprep.subr.mxu0 0.0
        %996 = vmatpush1.msra.mxu0 0.0
        %997 = vmatprep.subr.mxu0 0.0
        %998 = vmatpush1.msra.mxu0 0.0
        %999 = vmatprep.subr.mxu0 0.0
        %1000 = vmatpush1.msra.mxu0 0.0
        %1001 = vmatprep.subr.mxu0 0.0
        %1002 = vmatpush1.msra.mxu0 0.0
        %1003 = vmatprep.subr.mxu0 0.0
        %1004 = vmatpush1.msra.mxu0 0.0
        %1005 = vmatprep.subr.mxu0 0.0
        %1006 = vmatpush1.msra.mxu0 0.0
        %1007 = vmatprep.subr.mxu0 0.0
        %1008 = vmatpush1.msra.mxu0 0.0
        %1009 = vmatprep.subr.mxu0 0.0
        %1010 = vmatpush1.msra.mxu0 0.0
        %1011 = vmatprep.subr.mxu0 0.0
        %1012 = vmatpush1.msra.mxu0 0.0
        %1013 = vmatprep.subr.mxu0 0.0
        %1014 = vmatpush1.msra.mxu0 0.0
        %1015 = vmatprep.subr.mxu0 0.0
        %1016 = vmatpush1.msra.mxu0 0.0
        %1017 = vmatprep.subr.mxu0 0.0
        %1018 = vmatpush1.msra.mxu0 0.0
        %1019 = vmatprep.subr.mxu0 0.0
        %1020 = vmatpush1.msra.mxu0 0.0
        %1021 = vmatprep.subr.mxu0 0.0
        %1022 = vmatpush1.msra.mxu0 0.0
        %1023 = vmatprep.subr.mxu0 0.0
        %1024 = vmatpush1.msra.mxu0 0.0
        %1025 = vmatprep.subr.mxu0 0.0
        %1026 = vmatpush1.msra.mxu0 0.0
        %1027 = vmatprep.mubr.f32.mxu0 0.0
        %1028 = vmatmul.mubr.f32.gmra.mrb[0].mxu0 %v961
        %v1029 = vpop.f32.mrb[0].mxu0
        %v1030 = vadd.f32 0.0, %v1029
        %v1031 = vpop.f32.mrb[0].mxu0
        %1032 = vdwg.mxu0
        %1034 = vrot.lane.b32.xlu0 %v700, 8
        %v1035 = vpop.permute.xlu0 %1034
        %1038 = vrot.lane.b32.xlu0 %v865, 16
        %v1039 = vpop.permute.xlu0 %1038
        %1042 = vrot.lane.b32.xlu0 %v1030, 24
        %v1043 = vpop.permute.xlu0 %1042
        %v1045 = vsel %vm376, %v535, %v1035
        %vm1046 = vcmask 130048
        %v1047 = vsel %vm1046, %v1045, %v1039
        %vm1048 = vcmask 195584
        %v1049 = vsel %vm1048, %v1047, %v1043
        %v1050 = vld [vmem:[%s3] sm:$0xff]
        %v1051 = vld [vmem:[%s3 + $0x8] sm:$0xff]
        %v1052 = vld [vmem:[%s3 + $0x10] sm:$0xff]
        %v1053 = vld [vmem:[%s3 + $0x18] sm:$0xff]
        %v1054 = vlaneseq
        %v1055 = vshrl.u32 %v1054, 7
        %v1056 = vsub.s32 1, %v1055
        %v1057 = vrot.slane %v275, %v1056
        %v1059 = vsel %vm277, %v1049, 0
        %1061 = vmatprep.subr.mxu0 0.0
        %1062 = vmatpush1.msra.mxu0 %v1050
        %1063 = vmatprep.subr.mxu0 0.0
        %1064 = vmatpush1.msra.mxu0 %v1051
        %1065 = vmatprep.subr.mxu0 0.0
        %1066 = vmatpush1.msra.mxu0 %v1052
        %1067 = vmatprep.subr.mxu0 0.0
        %1068 = vmatpush1.msra.mxu0 %v1053
        %1069 = vmatprep.subr.mxu0 0.0
        %1070 = vmatpush1.msra.mxu0 0.0
        %1071 = vmatprep.subr.mxu0 0.0
        %1072 = vmatpush1.msra.mxu0 0.0
        %1073 = vmatprep.subr.mxu0 0.0
        %1074 = vmatpush1.msra.mxu0 0.0
        %1075 = vmatprep.subr.mxu0 0.0
        %1076 = vmatpush1.msra.mxu0 0.0
        %1077 = vmatprep.subr.mxu0 0.0
        %1078 = vmatpush1.msra.mxu0 0.0
        %1079 = vmatprep.subr.mxu0 0.0
        %1080 = vmatpush1.msra.mxu0 0.0
        %1081 = vmatprep.subr.mxu0 0.0
        %1082 = vmatpush1.msra.mxu0 0.0
        %1083 = vmatprep.subr.mxu0 0.0
        %1084 = vmatpush1.msra.mxu0 0.0
        %1085 = vmatprep.subr.mxu0 0.0
        %1086 = vmatpush1.msra.mxu0 0.0
        %1087 = vmatprep.subr.mxu0 0.0
        %1088 = vmatpush1.msra.mxu0 0.0
        %1089 = vmatprep.subr.mxu0 0.0
        %1090 = vmatpush1.msra.mxu0 0.0
        %1091 = vmatprep.subr.mxu0 0.0
        %1092 = vmatpush1.msra.mxu0 0.0
        %1093 = vmatprep.subr.mxu0 0.0
        %1094 = vmatpush1.msra.mxu0 0.0
        %1095 = vmatprep.subr.mxu0 0.0
        %1096 = vmatpush1.msra.mxu0 0.0
        %1097 = vmatprep.subr.mxu0 0.0
        %1098 = vmatpush1.msra.mxu0 0.0
        %1099 = vmatprep.subr.mxu0 0.0
        %1100 = vmatpush1.msra.mxu0 0.0
        %1101 = vmatprep.subr.mxu0 0.0
        %1102 = vmatpush1.msra.mxu0 0.0
        %1103 = vmatprep.subr.mxu0 0.0
        %1104 = vmatpush1.msra.mxu0 0.0
        %1105 = vmatprep.subr.mxu0 0.0
        %1106 = vmatpush1.msra.mxu0 0.0
        %1107 = vmatprep.subr.mxu0 0.0
        %1108 = vmatpush1.msra.mxu0 0.0
        %1109 = vmatprep.subr.mxu0 0.0
        %1110 = vmatpush1.msra.mxu0 0.0
        %1111 = vmatprep.subr.mxu0 0.0
        %1112 = vmatpush1.msra.mxu0 0.0
        %1113 = vmatprep.subr.mxu0 0.0
        %1114 = vmatpush1.msra.mxu0 0.0
        %1115 = vmatprep.subr.mxu0 0.0
        %1116 = vmatpush1.msra.mxu0 0.0
        %1117 = vmatprep.subr.mxu0 0.0
        %1118 = vmatpush1.msra.mxu0 0.0
        %1119 = vmatprep.subr.mxu0 0.0
        %1120 = vmatpush1.msra.mxu0 0.0
        %1121 = vmatprep.subr.mxu0 0.0
        %1122 = vmatpush1.msra.mxu0 0.0
        %1123 = vmatprep.subr.mxu0 0.0
        %1124 = vmatpush1.msra.mxu0 0.0
        %1125 = vmatprep.mubr.f32.mxu0 0.0
        %1126 = vmatmul.mubr.f32.gmra.mrb[0].mxu0 %v1059
        %v1127 = vpop.f32.mrb[0].mxu0
        %v1128 = vadd.f32 %v1057, %v1127
        %v1129 = vpop.f32.mrb[0].mxu0
        %1130 = vdwg.mxu0
        %v1131 = vadd.f32 %v274, %v1128
        %v1132 = vsel %vm277, %v1131, 0.0
        %1133 = vadd.xlane.f32.xlu0 %v1132
        %v1134 = vpop.xlane.xlu0 %1133
        %v1135 = vmul.f32 %v1134, %v281
        %v1136 = vsub.f32 %v1131, %v1135
        %v1137 = vmul.f32 %v1136, %v1136
        %v1138 = vsel %vm277, %v1137, 0.0
        %1139 = vadd.xlane.f32.xlu0 %v1138
        %v1140 = vpop.xlane.xlu0 %1139
        %v1141 = vmul.f32 %v1140, %v281
        %v1142 = vadd.f32 %v1141, 1e-05
        %v1143 = vrsqrt.pop %v1142
        %v1144 = vmul.f32 %v1136, %v1143
        %v1145 = vld [vmem:[%s4] sm:$0xff]
        %v1146 = vld [vmem:[%s4 + $0x8] sm:$0xff]
        %v1147 = vld [vmem:[%s4 + $0x10] sm:$0xff]
        %v1148 = vld [vmem:[%s4 + $0x18] sm:$0xff]
        %v1149 = vlaneseq
        %v1150 = vshrl.u32 %v1149, 7
        %v1151 = vsub.s32 2, %v1150
        %v1152 = vrot.slane %v275, %v1151
        %v1154 = vsel %vm277, %v1144, 0
        %1156 = vmatprep.subr.mxu0 0.0
        %1157 = vmatpush1.msra.mxu0 %v1145
        %1158 = vmatprep.subr.mxu0 0.0
        %1159 = vmatpush1.msra.mxu0 %v1146
        %1160 = vmatprep.subr.mxu0 0.0
        %1161 = vmatpush1.msra.mxu0 %v1147
        %1162 = vmatprep.subr.mxu0 0.0
        %1163 = vmatpush1.msra.mxu0 %v1148
        %1164 = vmatprep.subr.mxu0 0.0
        %1165 = vmatpush1.msra.mxu0 0.0
        %1166 = vmatprep.subr.mxu0 0.0
        %1167 = vmatpush1.msra.mxu0 0.0
        %1168 = vmatprep.subr.mxu0 0.0
        %1169 = vmatpush1.msra.mxu0 0.0
        %1170 = vmatprep.subr.mxu0 0.0
        %1171 = vmatpush1.msra.mxu0 0.0
        %1172 = vmatprep.subr.mxu0 0.0
        %1173 = vmatpush1.msra.mxu0 0.0
        %1174 = vmatprep.subr.mxu0 0.0
        %1175 = vmatpush1.msra.mxu0 0.0
        %1176 = vmatprep.subr.mxu0 0.0
        %1177 = vmatpush1.msra.mxu0 0.0
        %1178 = vmatprep.subr.mxu0 0.0
        %1179 = vmatpush1.msra.mxu0 0.0
        %1180 = vmatprep.subr.mxu0 0.0
        %1181 = vmatpush1.msra.mxu0 0.0
        %1182 = vmatprep.subr.mxu0 0.0
        %1183 = vmatpush1.msra.mxu0 0.0
        %1184 = vmatprep.subr.mxu0 0.0
        %1185 = vmatpush1.msra.mxu0 0.0
        %1186 = vmatprep.subr.mxu0 0.0
        %1187 = vmatpush1.msra.mxu0 0.0
        %1188 = vmatprep.subr.mxu0 0.0
        %1189 = vmatpush1.msra.mxu0 0.0
        %1190 = vmatprep.subr.mxu0 0.0
        %1191 = vmatpush1.msra.mxu0 0.0
        %1192 = vmatprep.subr.mxu0 0.0
        %1193 = vmatpush1.msra.mxu0 0.0
        %1194 = vmatprep.subr.mxu0 0.0
        %1195 = vmatpush1.msra.mxu0 0.0
        %1196 = vmatprep.subr.mxu0 0.0
        %1197 = vmatpush1.msra.mxu0 0.0
        %1198 = vmatprep.subr.mxu0 0.0
        %1199 = vmatpush1.msra.mxu0 0.0
        %1200 = vmatprep.subr.mxu0 0.0
        %1201 = vmatpush1.msra.mxu0 0.0
        %1202 = vmatprep.subr.mxu0 0.0
        %1203 = vmatpush1.msra.mxu0 0.0
        %1204 = vmatprep.subr.mxu0 0.0
        %1205 = vmatpush1.msra.mxu0 0.0
        %1206 = vmatprep.subr.mxu0 0.0
        %1207 = vmatpush1.msra.mxu0 0.0
        %1208 = vmatprep.subr.mxu0 0.0
        %1209 = vmatpush1.msra.mxu0 0.0
        %1210 = vmatprep.subr.mxu0 0.0
        %1211 = vmatpush1.msra.mxu0 0.0
        %1212 = vmatprep.subr.mxu0 0.0
        %1213 = vmatpush1.msra.mxu0 0.0
        %1214 = vmatprep.subr.mxu0 0.0
        %1215 = vmatpush1.msra.mxu0 0.0
        %1216 = vmatprep.subr.mxu0 0.0
        %1217 = vmatpush1.msra.mxu0 0.0
        %1218 = vmatprep.subr.mxu0 0.0
        %1219 = vmatpush1.msra.mxu0 0.0
        %1220 = vmatprep.mubr.f32.mxu0 0.0
        %1221 = vmatmul.mubr.f32.gmra.mrb[0].mxu0 %v1154
        %v1222 = vpop.f32.mrb[0].mxu0
        %v1223 = vadd.f32 %v1152, %v1222
        %v1224 = vpop.f32.mrb[0].mxu0
        %1225 = vdwg.mxu0
        %v1226 = vmax.f32 %v1223, 0.0
        %v1227 = vld [vmem:[%s5] sm:$0xff]
        %v1228 = vld [vmem:[%s5 + $0x8] sm:$0xff]
        %v1229 = vld [vmem:[%s5 + $0x10] sm:$0xff]
        %v1230 = vld [vmem:[%s5 + $0x18] sm:$0xff]
        %v1231 = vld [vmem:[%s5 + $0x20] sm:$0xff]
        %v1232 = vld [vmem:[%s5 + $0x28] sm:$0xff]
        %v1233 = vld [vmem:[%s5 + $0x30] sm:$0xff]
        %v1234 = vld [vmem:[%s5 + $0x38] sm:$0xff]
        %v1235 = vld [vmem:[%s5 + $0x40] sm:$0xff]
        %v1236 = vld [vmem:[%s5 + $0x48] sm:$0xff]
        %v1237 = vld [vmem:[%s5 + $0x50] sm:$0xff]
        %v1238 = vld [vmem:[%s5 + $0x58] sm:$0xff]
        %v1239 = vld [vmem:[%s5 + $0x60] sm:$0xff]
        %v1240 = vld [vmem:[%s5 + $0x68] sm:$0xff]
        %v1241 = vld [vmem:[%s5 + $0x70] sm:$0xff]
        %v1242 = vld [vmem:[%s5 + $0x78] sm:$0xff]
        %v1243 = vlaneseq
        %v1244 = vshrl.u32 %v1243, 7
        %v1245 = vsub.s32 3, %v1244
        %v1246 = vrot.slane %v275, %v1245
        %1247 = vmatprep.subr.mxu0 0.0
        %1248 = vmatpush1.msra.mxu0 %v1227
        %1249 = vmatprep.subr.mxu0 0.0
        %1250 = vmatpush1.msra.mxu0 %v1228
        %1251 = vmatprep.subr.mxu0 0.0
        %1252 = vmatpush1.msra.mxu0 %v1229
        %1253 = vmatprep.subr.mxu0 0.0
        %1254 = vmatpush1.msra.mxu0 %v1230
        %1255 = vmatprep.subr.mxu0 0.0
        %1256 = vmatpush1.msra.mxu0 %v1231
        %1257 = vmatprep.subr.mxu0 0.0
        %1258 = vmatpush1.msra.mxu0 %v1232
        %1259 = vmatprep.subr.mxu0 0.0
        %1260 = vmatpush1.msra.mxu0 %v1233
        %1261 = vmatprep.subr.mxu0 0.0
        %1262 = vmatpush1.msra.mxu0 %v1234
        %1263 = vmatprep.subr.mxu0 0.0
        %1264 = vmatpush1.msra.mxu0 %v1235
        %1265 = vmatprep.subr.mxu0 0.0
        %1266 = vmatpush1.msra.mxu0 %v1236
        %1267 = vmatprep.subr.mxu0 0.0
        %1268 = vmatpush1.msra.mxu0 %v1237
        %1269 = vmatprep.subr.mxu0 0.0
        %1270 = vmatpush1.msra.mxu0 %v1238
        %1271 = vmatprep.subr.mxu0 0.0
        %1272 = vmatpush1.msra.mxu0 %v1239
        %1273 = vmatprep.subr.mxu0 0.0
        %1274 = vmatpush1.msra.mxu0 %v1240
        %1275 = vmatprep.subr.mxu0 0.0
        %1276 = vmatpush1.msra.mxu0 %v1241
        %1277 = vmatprep.subr.mxu0 0.0
        %1278 = vmatpush1.msra.mxu0 %v1242
        %1279 = vmatprep.subr.mxu0 0.0
        %1280 = vmatpush1.msra.mxu0 0.0
        %1281 = vmatprep.subr.mxu0 0.0
        %1282 = vmatpush1.msra.mxu0 0.0
        %1283 = vmatprep.subr.mxu0 0.0
        %1284 = vmatpush1.msra.mxu0 0.0
        %1285 = vmatprep.subr.mxu0 0.0
        %1286 = vmatpush1.msra.mxu0 0.0
        %1287 = vmatprep.subr.mxu0 0.0
        %1288 = vmatpush1.msra.mxu0 0.0
        %1289 = vmatprep.subr.mxu0 0.0
        %1290 = vmatpush1.msra.mxu0 0.0
        %1291 = vmatprep.subr.mxu0 0.0
        %1292 = vmatpush1.msra.mxu0 0.0
        %1293 = vmatprep.subr.mxu0 0.0
        %1294 = vmatpush1.msra.mxu0 0.0
        %1295 = vmatprep.subr.mxu0 0.0
        %1296 = vmatpush1.msra.mxu0 0.0
        %1297 = vmatprep.subr.mxu0 0.0
        %1298 = vmatpush1.msra.mxu0 0.0
        %1299 = vmatprep.subr.mxu0 0.0
        %1300 = vmatpush1.msra.mxu0 0.0
        %1301 = vmatprep.subr.mxu0 0.0
        %1302 = vmatpush1.msra.mxu0 0.0
        %1303 = vmatprep.subr.mxu0 0.0
        %1304 = vmatpush1.msra.mxu0 0.0
        %1305 = vmatprep.subr.mxu0 0.0
        %1306 = vmatpush1.msra.mxu0 0.0
        %1307 = vmatprep.subr.mxu0 0.0
        %1308 = vmatpush1.msra.mxu0 0.0
        %1309 = vmatprep.subr.mxu0 0.0
        %1310 = vmatpush1.msra.mxu0 0.0
        %1311 = vmatprep.mubr.f32.mxu0 0.0
        %1312 = vmatmul.mubr.f32.gmra.mrb[0].mxu0 %v1226
        %v1313 = vpop.f32.mrb[0].mxu0
        %v1314 = vadd.f32 %v1246, %v1313
        %v1315 = vpop.f32.mrb[0].mxu0
        %1316 = vdwg.mxu0
        %v1317 = vadd.f32 %v1131, %v1314
        %1318 = vst.msk [vmem:[%s269] sm:$0xff] %vm277, %v1317
        %s1319 = sand.u32 %s181, 1
        %s1320 = scalar_lea.sflag [#allocation3], %s1319
        %s1321 = sand.u32 %s181, 1
        %s1322 = smul.addr %s1321, 8
        %s1323 = scalar_lea.vmem [#allocation2], %s1322
        // Predicated region
        $region49: #{tpu_custom_call.1} parent=47 // pred_check
          %p1324 = pneg %p191
        $region50: #{tpu_custom_call.1} parent=47 // pred_check_branch
          %1326 = sbr.rel (%p1324) target = $region52
        $region51: #{tpu_custom_call.1} parent=47 // pred_region
          %s1328 = ssub.s32 128, 128
          %1329 = vsyncadd %s1320, %s1328
          %s1330 = smul.addr %s21, 128
          %s1331 = scalar_lea.hbm %s7, %s1330
          %s1333 = sshll.u32 %s1323, 4
          %s1334 = int_to_ptr.vmem [resolvable:$true] %s1333
          %1336 = dma.vmem_to_hbm [thread:$0]  %s1334, 128, %s1331, %s1320
        $region52: #{tpu_custom_call.1} parent=47 // pred_fallthru
          _
      $region48: #{tpu_custom_call.1} parent=5 // pred_fallthru
        _
      %p1337 = scmp.le.s32.totalorder 2, %s16
      // Predicated region
      $region53: #{tpu_custom_call.1} parent=5 // pred_check
        %p1338 = pneg %p1337
      $region54: #{tpu_custom_call.1} parent=5 // pred_check_branch
        %1340 = sbr.rel (%p1338) target = $region56
      $region55: #{tpu_custom_call.1} parent=5 // pred_region
        %s1341 = ssub.s32 %s16, 2
        // Predicated region
        $region57: #{tpu_custom_call.1} parent=55 // pred_check
          %p1342 = pneg %p197
        $region58: #{tpu_custom_call.1} parent=55 // pred_check_branch
          %1344 = sbr.rel (%p1342) target = $region60
        $region59: #{tpu_custom_call.1} parent=55 // pred_region
          %s1345 = sand.u32 %s182, 1
          %s1346 = scalar_lea.sflag [#allocation3], %s1345
          %s1347 = sand.u32 %s182, 1
          %s1348 = smul.addr %s1347, 8
          %s1349 = scalar_lea.vmem [#allocation2], %s1348
          %1350 = dma.done %s1346, 128
        $region60: #{tpu_custom_call.1} parent=55 // pred_fallthru
          _
      $region56: #{tpu_custom_call.1} parent=5 // pred_fallthru
        _
    $region6: #{tpu_custom_call.1} parent=1 // loop_footer
      %s20 = sadd.s32 1, %s16
    $region7: #{tpu_custom_call.1} parent=1 // loop_footer_branch
      %15 = sbr.rel target = $region3
    $region8: #{tpu_custom_call.1} parent=1 // loop_exit
      _
    %1351 = vsyncpa [#allocation3], 1
    %s1352 = scalar_lea.sflag [#allocation3], 1
    %1353 = vsyncpa %s1352, 1

</llo_original>
